<compile_context>
chip_gen: v7x
topology: tpu7x:2x2x1
jax: 0.10.0
libtpu: 0.0.40
codegen_flags: <defaults>
</compile_context>

<pallas_src>
import functools
import math

import jax
import jax.numpy as jnp
from jax.experimental import pallas as pl
from jax.experimental.pallas import tpu as pltpu

LANE = 128                    # pad feature dims to lane width (unmasked vst writeback)
SUBLANE_PACK = 16             # bf16 sublane packing granule for the batch dim
MAX_TILE_B = 8192             # batch-tile cap (amortizes per-step pipeline overhead)
VMEM_TARGET = 44 * 1024 * 1024   # working-set budget for tile derivation (< v7x 64 MiB)
VMEM_LIMIT = 48 * 1024 * 1024    # scoped-VMEM request (> v5e's 16 MiB default)


def _round_up(n, m):
    return ((n + m - 1) // m) * m


def _bf16_elementwise_supported():
    """bf16 VPU/EUP exists on v6e/v7x; v5e and older should keep f32 elementwise."""
    try:
        kind = jax.devices()[0].device_kind.lower()
    except Exception:
        return False
    return not any(tag in kind for tag in ("v2", "v3", "v4", "v5"))


def mlp_kernel(x_ref,
               w1_ref, b1_ref,
               w2_ref, b2_ref,
               w3_ref, b3_ref,
               w4_ref, b4_ref,
               o_ref, *, act_dtype):
    """Fused 4-layer MLP forward for one batch tile.

    x_ref:  (TILE_B, in_f) f32 (cast to bf16 in-kernel, hidden under the DMAs)
    wN_ref: bf16, zero-padded lane-dense; hidden biases in `act_dtype`, b4 f32
    o_ref:  (TILE_B, OUT_PAD) bf16 (lane-dense writeback, half the f32 bytes)
    """
    x = x_ref[...].astype(jnp.bfloat16)

    def linear_relu(a, w_ref, b_ref):
        z = jnp.dot(a, w_ref[...], preferred_element_type=jnp.float32)
        z = z.astype(act_dtype) + b_ref[...]          # bf16 on v6e/v7x, f32 on v5e
        return jnp.maximum(z, 0.0).astype(jnp.bfloat16)

    h = linear_relu(x, w1_ref, b1_ref)
    h = linear_relu(h, w2_ref, b2_ref)
    h = linear_relu(h, w3_ref, b3_ref)

    # Final Linear + Sigmoid in f32; tanh form = single EUP op, no approx-recip error.
    z = jnp.dot(h, w4_ref[...], preferred_element_type=jnp.float32) + b4_ref[...]
    o_ref[...] = (0.5 * (jnp.tanh(0.5 * z) + 1.0)).astype(o_ref.dtype)


def prepare_params(params, act_dtype):
    """Zero-pad hidden/output dims to multiples of 128; weights -> bf16.

    Zero rows/cols + zero bias keep the real columns unchanged (ReLU(0)=0 so padded
    lanes contribute nothing downstream).
    """
    (w1, b1), (w2, b2), (w3, b3), (w4, b4) = params
    in_f, hidden = w1.shape
    out_f = w4.shape[1]
    hp = _round_up(hidden, LANE)
    op = _round_up(out_f, LANE)

    def pad2(a, rows, cols, dtype):
        a = jnp.pad(a, ((0, rows - a.shape[0]), (0, cols - a.shape[1])))
        return a.astype(dtype)

    w1p = pad2(w1, in_f, hp, jnp.bfloat16)
    b1p = pad2(b1, 1, hp, act_dtype)
    w2p = pad2(w2, hp, hp, jnp.bfloat16)
    b2p = pad2(b2, 1, hp, act_dtype)
    w3p = pad2(w3, hp, hp, jnp.bfloat16)
    b3p = pad2(b3, 1, hp, act_dtype)
    w4p = pad2(w4, hp, op, jnp.bfloat16)
    b4p = pad2(b4, 1, op, jnp.float32)     # final bias stays f32 (pre-sigmoid accuracy)
    return (w1p, b1p, w2p, b2p, w3p, b3p, w4p, b4p), out_f, hp, op


def _derive_tile_b(batch, in_f, hp, op, weight_alloc_bytes):
    """Largest batch tile that fits the VMEM budget, but always >=2 grid steps."""
    per_row = (2 * in_f * 4        # x tile, f32, double-buffered
               + 2 * op * 2        # bf16 out tile, double-buffered
               + 16 * hp)          # live f32/bf16 intermediate activations (generous)
    avail = max(VMEM_TARGET - weight_alloc_bytes, per_row * SUBLANE_PACK)
    vmem_cap = (avail // per_row // SUBLANE_PACK) * SUBLANE_PACK
    batch_16 = _round_up(batch, SUBLANE_PACK)
    # Keep at least 2 tiles so ("parallel",) can split the batch over v7x's two TCs.
    half = _round_up(pl.cdiv(batch_16, 2), SUBLANE_PACK)
    return max(SUBLANE_PACK, min(MAX_TILE_B, vmem_cap, half))


def torch_neural_net_forward(x, params, tile_b=None):
    """Batch-tiled, weight-resident pallas_call. x: (batch, input_size) f32."""
    batch, in_f = x.shape
    act_dtype = jnp.bfloat16 if _bf16_elementwise_supported() else jnp.float32
    padded, out_f, hp, op = prepare_params(params, act_dtype)
    w1p, b1p, w2p, b2p, w3p, b3p, w4p, b4p = padded

    # Weight/bias VMEM assuming single buffering (constant index_map => fetched once).
    weight_alloc = 2 * (in_f * hp + 2 * hp * hp + hp * op) + 4 * 4 * max(hp, op)

    if tile_b is None:
        tile_b = _derive_tile_b(batch, in_f, hp, op, weight_alloc)
    tile_b = max(SUBLANE_PACK, _round_up(tile_b, SUBLANE_PACK))
    batch_pad = _round_up(batch, tile_b)

    # x stays f32; the bf16 cast happens in-kernel. Skip the pad pass when possible.
    x_p = x if batch_pad == batch else jnp.pad(x, ((0, batch_pad - batch), (0, 0)))

    grid = (batch_pad // tile_b,)

    # Advisory cost estimate for XLA scheduling.
    flops = 2 * batch_pad * (in_f * hp + 2 * hp * hp + hp * op)
    transcendentals = batch_pad * op
    bytes_accessed = (
        x_p.size * 4
        + (w1p.size + w2p.size + w3p.size + w4p.size) * 2
        + (b1p.size + b2p.size + b3p.size) * b1p.dtype.itemsize
        + b4p.size * 4
        + batch_pad * op * 2
    )

    vmem_limit = int(min(max(VMEM_LIMIT, weight_alloc + (16 << 20)), 120 << 20))

    def build(single_buffer_weights):
        wmode = dict(pipeline_mode=pl.Buffered(1)) if single_buffer_weights else {}
        const2 = lambda i: (0, 0)
        in_specs = [
            pl.BlockSpec((tile_b, in_f), lambda i: (i, 0)),   # x streams over batch
            pl.BlockSpec(w1p.shape, const2, **wmode),         # weights/biases resident
            pl.BlockSpec(b1p.shape, const2, **wmode),
            pl.BlockSpec(w2p.shape, const2, **wmode),
            pl.BlockSpec(b2p.shape, const2, **wmode),
            pl.BlockSpec(w3p.shape, const2, **wmode),
            pl.BlockSpec(b3p.shape, const2, **wmode),
            pl.BlockSpec(w4p.shape, const2, **wmode),
            pl.BlockSpec(b4p.shape, const2, **wmode),
        ]
        return pl.pallas_call(
            functools.partial(mlp_kernel, act_dtype=act_dtype),
            out_shape=jax.ShapeDtypeStruct((batch_pad, op), jnp.bfloat16),
            grid=grid,
            in_specs=in_specs,
            out_specs=pl.BlockSpec((tile_b, op), lambda i: (i, 0)),  # lane-dense bf16
            compiler_params=pltpu.CompilerParams(
                dimension_semantics=("parallel",),          # 2 TCs on v7x
                vmem_limit_bytes=vmem_limit,                # v5e default is only 16 MiB
            ),
            cost_estimate=pl.CostEstimate(
                flops=int(flops),
                transcendentals=int(transcendentals),
                bytes_accessed=int(bytes_accessed),
            ),
        )

    args = (x_p, w1p, b1p, w2p, b2p, w3p, b3p, w4p, b4p)
    try:
        out = build(True)(*args)
    except Exception:
        # Fallback: this jax build rejected pipeline_mode=pl.Buffered(1) on BlockSpec;
        # default double-buffered weights are correct, just use a bit more VMEM.
        out = build(False)(*args)

    return out[:batch, :out_f].astype(jnp.float32)


def init_linear_params(key, in_features, out_features):
    """PyTorch nn.Linear-style U(-1/sqrt(fan_in), +1/sqrt(fan_in)) init.

    Weight returned pre-transposed: (in_features, out_features); bias (1, out)."""
    k_w, k_b = jax.random.split(key)
    bound = 1.0 / math.sqrt(in_features)
    w = jax.random.uniform(k_w, (in_features, out_features),
                           minval=-bound, maxval=bound, dtype=jnp.float32)
    b = jax.random.uniform(k_b, (1, out_features),
                           minval=-bound, maxval=bound, dtype=jnp.float32)
    return w, b


def build_params(key, input_size, hidden_size):
    keys = jax.random.split(key, 4)
    p1 = init_linear_params(keys[0], input_size, hidden_size)
    p2 = init_linear_params(keys[1], hidden_size, hidden_size)
    p3 = init_linear_params(keys[2], hidden_size, hidden_size)
    p4 = init_linear_params(keys[3], hidden_size, 3)
    return (p1, p2, p3, p4)


def reference_forward(x, params, *, mimic_kernel, act_dtype=jnp.float32):
    """Pure-JAX reference of TorchNeuralNet.forward.

    mimic_kernel=True mirrors the kernel's bf16 matmul inputs / elementwise dtype /
    tanh sigmoid / bf16 output rounding for a tight check; False is plain f32."""
    (w1, b1), (w2, b2), (w3, b3), (w4, b4) = params

    if not mimic_kernel:
        h = jnp.maximum(x @ w1 + b1, 0.0)
        h = jnp.maximum(h @ w2 + b2, 0.0)
        h = jnp.maximum(h @ w3 + b3, 0.0)
        return jax.nn.sigmoid(h @ w4 + b4)

    def linear_relu(a, w, b):
        z = jnp.dot(a, w.astype(jnp.bfloat16), preferred_element_type=jnp.float32)
        z = z.astype(act_dtype) + b.astype(act_dtype)
        return jnp.maximum(z, 0.0).astype(jnp.bfloat16)

    h = linear_relu(x.astype(jnp.bfloat16), w1, b1)
    h = linear_relu(h, w2, b2)
    h = linear_relu(h, w3, b3)
    z = jnp.dot(h, w4.astype(jnp.bfloat16), preferred_element_type=jnp.float32) + b4
    y = 0.5 * (jnp.tanh(0.5 * z) + 1.0)
    return y.astype(jnp.bfloat16).astype(jnp.float32)


if __name__ == "__main__":
    # Small shapes consistent with the module: x is [batch, input_size], hidden=256
    # (the module's default), output width 3.
    batch = 50
    input_size = 16
    hidden_size = 256

    key = jax.random.PRNGKey(0)
    k_x, k_p = jax.random.split(key)
    x = jax.random.normal(k_x, (batch, input_size), dtype=jnp.float32)
    params = build_params(k_p, input_size, hidden_size)

    act_dtype = jnp.bfloat16 if _bf16_elementwise_supported() else jnp.float32

    # Derived tile path: batch 50 -> tile 32, grid=(2,) (megacore-splittable).
    out = jax.block_until_ready(torch_neural_net_forward(x, params))
    assert out.shape == (batch, 3)

    # Explicit small tile: 4 grid steps, exercises the streaming pipeline.
    out_small = jax.block_until_ready(torch_neural_net_forward(x, params, tile_b=16))
    assert out_small.shape == (batch, 3)
    assert jnp.allclose(out, out_small, atol=1e-3, rtol=1e-3), "tile-size dependence"

    # Tight check vs a reference using the exact kernel numerics (bf16 matmul inputs,
    # matching elementwise dtype, tanh sigmoid, bf16 output rounding); loose check vs
    # full-f32 PyTorch semantics.
    ref_match = reference_forward(x, params, mimic_kernel=True, act_dtype=act_dtype)
    ref_f32 = reference_forward(x, params, mimic_kernel=False)
    assert jnp.allclose(out, ref_match, atol=1e-2, rtol=1e-2), "mismatch vs bf16 reference"
    assert jnp.allclose(out, ref_f32, atol=4e-2, rtol=4e-2), "mismatch vs f32 reference"

    print("KERNEL_OK")
</pallas_src>

<mosaic_0001>
module attributes {stable_mosaic.version = 11 : i64} {
  func.func @mlp_kernel(%arg0: i32, %arg1: memref<32x16xf32, #tpu.memory_space<vmem>>, %arg2: memref<16x256xbf16, #tpu.memory_space<vmem>>, %arg3: memref<1x256xbf16, #tpu.memory_space<vmem>>, %arg4: memref<256x256xbf16, #tpu.memory_space<vmem>>, %arg5: memref<1x256xbf16, #tpu.memory_space<vmem>>, %arg6: memref<256x256xbf16, #tpu.memory_space<vmem>>, %arg7: memref<1x256xbf16, #tpu.memory_space<vmem>>, %arg8: memref<256x128xbf16, #tpu.memory_space<vmem>>, %arg9: memref<1x128xf32, #tpu.memory_space<vmem>>, %arg10: memref<32x128xbf16, #tpu.memory_space<vmem>>) attributes {dimension_semantics = [#tpu.dimension_semantics<parallel>], iteration_bounds = array<i64: 2>, scalar_prefetch = 0 : i64, scratch_operands = 0 : i64, tpu.core_type = #tpu.core_type<tc>, window_params = [{transform_indices = @transform_0, window_bounds = array<i64: 32, 16>}, {pipeline_mode = #tpu.pipeline_mode<synchronous>, transform_indices = @transform_1, window_bounds = array<i64: 16, 256>}, {pipeline_mode = #tpu.pipeline_mode<synchronous>, transform_indices = @transform_2, window_bounds = array<i64: 1, 256>}, {pipeline_mode = #tpu.pipeline_mode<synchronous>, transform_indices = @transform_3, window_bounds = array<i64: 256, 256>}, {pipeline_mode = #tpu.pipeline_mode<synchronous>, transform_indices = @transform_4, window_bounds = array<i64: 1, 256>}, {pipeline_mode = #tpu.pipeline_mode<synchronous>, transform_indices = @transform_5, window_bounds = array<i64: 256, 256>}, {pipeline_mode = #tpu.pipeline_mode<synchronous>, transform_indices = @transform_6, window_bounds = array<i64: 1, 256>}, {pipeline_mode = #tpu.pipeline_mode<synchronous>, transform_indices = @transform_7, window_bounds = array<i64: 256, 128>}, {pipeline_mode = #tpu.pipeline_mode<synchronous>, transform_indices = @transform_8, window_bounds = array<i64: 1, 128>}, {transform_indices = @transform_9, window_bounds = array<i64: 32, 128>}]} {
    %c0 = arith.constant 0 : index
    %c0_0 = arith.constant 0 : index
    %0 = vector.load %arg1[%c0, %c0_0] : memref<32x16xf32, #tpu.memory_space<vmem>>, vector<32x16xf32>
    %1 = arith.truncf %0 : vector<32x16xf32> to vector<32x16xbf16>
    %c0_1 = arith.constant 0 : index
    %c0_2 = arith.constant 0 : index
    %2 = vector.load %arg2[%c0_1, %c0_2] : memref<16x256xbf16, #tpu.memory_space<vmem>>, vector<16x256xbf16>
    %cst = arith.constant dense<0.000000e+00> : vector<32x256xf32>
    %3 = tpu.matmul %1, %2, %cst {dimension_numbers = #tpu.dot_dimension_numbers<[1], [0], [0], [1], [0, 0, 1, 1], [], []>} : vector<32x16xbf16>, vector<16x256xbf16>, vector<32x256xf32> -> vector<32x256xf32>
    %4 = arith.truncf %3 : vector<32x256xf32> to vector<32x256xbf16>
    %c0_3 = arith.constant 0 : index
    %c0_4 = arith.constant 0 : index
    %5 = vector.load %arg3[%c0_3, %c0_4] : memref<1x256xbf16, #tpu.memory_space<vmem>>, vector<1x256xbf16>
    %6 = vector.broadcast %5 : vector<1x256xbf16> to vector<32x256xbf16>
    %7 = arith.addf %4, %6 : vector<32x256xbf16>
    %cst_5 = arith.constant 0.000000e+00 : bf16
    %8 = vector.broadcast %cst_5 : bf16 to vector<32x256xbf16>
    %9 = arith.maximumf %7, %8 : vector<32x256xbf16>
    %c0_6 = arith.constant 0 : index
    %c0_7 = arith.constant 0 : index
    %10 = vector.load %arg4[%c0_6, %c0_7] : memref<256x256xbf16, #tpu.memory_space<vmem>>, vector<256x256xbf16>
    %cst_8 = arith.constant dense<0.000000e+00> : vector<32x256xf32>
    %11 = tpu.matmul %9, %10, %cst_8 {dimension_numbers = #tpu.dot_dimension_numbers<[1], [0], [0], [1], [0, 0, 1, 1], [], []>} : vector<32x256xbf16>, vector<256x256xbf16>, vector<32x256xf32> -> vector<32x256xf32>
    %12 = arith.truncf %11 : vector<32x256xf32> to vector<32x256xbf16>
    %c0_9 = arith.constant 0 : index
    %c0_10 = arith.constant 0 : index
    %13 = vector.load %arg5[%c0_9, %c0_10] : memref<1x256xbf16, #tpu.memory_space<vmem>>, vector<1x256xbf16>
    %14 = vector.broadcast %13 : vector<1x256xbf16> to vector<32x256xbf16>
    %15 = arith.addf %12, %14 : vector<32x256xbf16>
    %cst_11 = arith.constant 0.000000e+00 : bf16
    %16 = vector.broadcast %cst_11 : bf16 to vector<32x256xbf16>
    %17 = arith.maximumf %15, %16 : vector<32x256xbf16>
    %c0_12 = arith.constant 0 : index
    %c0_13 = arith.constant 0 : index
    %18 = vector.load %arg6[%c0_12, %c0_13] : memref<256x256xbf16, #tpu.memory_space<vmem>>, vector<256x256xbf16>
    %cst_14 = arith.constant dense<0.000000e+00> : vector<32x256xf32>
    %19 = tpu.matmul %17, %18, %cst_14 {dimension_numbers = #tpu.dot_dimension_numbers<[1], [0], [0], [1], [0, 0, 1, 1], [], []>} : vector<32x256xbf16>, vector<256x256xbf16>, vector<32x256xf32> -> vector<32x256xf32>
    %20 = arith.truncf %19 : vector<32x256xf32> to vector<32x256xbf16>
    %c0_15 = arith.constant 0 : index
    %c0_16 = arith.constant 0 : index
    %21 = vector.load %arg7[%c0_15, %c0_16] : memref<1x256xbf16, #tpu.memory_space<vmem>>, vector<1x256xbf16>
    %22 = vector.broadcast %21 : vector<1x256xbf16> to vector<32x256xbf16>
    %23 = arith.addf %20, %22 : vector<32x256xbf16>
    %cst_17 = arith.constant 0.000000e+00 : bf16
    %24 = vector.broadcast %cst_17 : bf16 to vector<32x256xbf16>
    %25 = arith.maximumf %23, %24 : vector<32x256xbf16>
    %c0_18 = arith.constant 0 : index
    %c0_19 = arith.constant 0 : index
    %26 = vector.load %arg8[%c0_18, %c0_19] : memref<256x128xbf16, #tpu.memory_space<vmem>>, vector<256x128xbf16>
    %cst_20 = arith.constant dense<0.000000e+00> : vector<32x128xf32>
    %27 = tpu.matmul %25, %26, %cst_20 {dimension_numbers = #tpu.dot_dimension_numbers<[1], [0], [0], [1], [0, 0, 1, 1], [], []>} : vector<32x256xbf16>, vector<256x128xbf16>, vector<32x128xf32> -> vector<32x128xf32>
    %c0_21 = arith.constant 0 : index
    %c0_22 = arith.constant 0 : index
    %28 = vector.load %arg9[%c0_21, %c0_22] : memref<1x128xf32, #tpu.memory_space<vmem>>, vector<1x128xf32>
    %29 = vector.broadcast %28 : vector<1x128xf32> to vector<32x128xf32>
    %30 = arith.addf %27, %29 : vector<32x128xf32>
    %cst_23 = arith.constant 5.000000e-01 : f32
    %31 = vector.broadcast %cst_23 : f32 to vector<32x128xf32>
    %32 = arith.mulf %31, %30 : vector<32x128xf32>
    %33 = math.tanh %32 : vector<32x128xf32>
    %cst_24 = arith.constant 1.000000e+00 : f32
    %34 = vector.broadcast %cst_24 : f32 to vector<32x128xf32>
    %35 = arith.addf %33, %34 : vector<32x128xf32>
    %cst_25 = arith.constant 5.000000e-01 : f32
    %36 = vector.broadcast %cst_25 : f32 to vector<32x128xf32>
    %37 = arith.mulf %36, %35 : vector<32x128xf32>
    %38 = arith.truncf %37 : vector<32x128xf32> to vector<32x128xbf16>
    %c0_26 = arith.constant 0 : index
    %c0_27 = arith.constant 0 : index
    %39 = vector.load %arg10[%c0_26, %c0_27] : memref<32x128xbf16, #tpu.memory_space<vmem>>, vector<32x128xbf16>
    tpu.vector_store %arg10[%c0_26, %c0_27], %38 {strides = array<i32>} : memref<32x128xbf16, #tpu.memory_space<vmem>>, vector<32x128xbf16>,
    return
  }
  func.func @transform_0(%arg0: i32) -> (i32, i32) {
    %c0_i32 = arith.constant 0 : i32
    %c0_i32_0 = arith.constant 0 : i32
    return %arg0, %c0_i32 : i32, i32
  }
  func.func @transform_1(%arg0: i32) -> (i32, i32) {
    %c0_i32 = arith.constant 0 : i32
    %c0_i32_0 = arith.constant 0 : i32
    %c0_i32_1 = arith.constant 0 : i32
    return %c0_i32, %c0_i32_0 : i32, i32
  }
  func.func @transform_2(%arg0: i32) -> (i32, i32) {
    %c0_i32 = arith.constant 0 : i32
    %c0_i32_0 = arith.constant 0 : i32
    %c0_i32_1 = arith.constant 0 : i32
    return %c0_i32, %c0_i32_0 : i32, i32
  }
  func.func @transform_3(%arg0: i32) -> (i32, i32) {
    %c0_i32 = arith.constant 0 : i32
    %c0_i32_0 = arith.constant 0 : i32
    %c0_i32_1 = arith.constant 0 : i32
    return %c0_i32, %c0_i32_0 : i32, i32
  }
  func.func @transform_4(%arg0: i32) -> (i32, i32) {
    %c0_i32 = arith.constant 0 : i32
    %c0_i32_0 = arith.constant 0 : i32
    %c0_i32_1 = arith.constant 0 : i32
    return %c0_i32, %c0_i32_0 : i32, i32
  }
  func.func @transform_5(%arg0: i32) -> (i32, i32) {
    %c0_i32 = arith.constant 0 : i32
    %c0_i32_0 = arith.constant 0 : i32
    %c0_i32_1 = arith.constant 0 : i32
    return %c0_i32, %c0_i32_0 : i32, i32
  }
  func.func @transform_6(%arg0: i32) -> (i32, i32) {
    %c0_i32 = arith.constant 0 : i32
    %c0_i32_0 = arith.constant 0 : i32
    %c0_i32_1 = arith.constant 0 : i32
    return %c0_i32, %c0_i32_0 : i32, i32
  }
  func.func @transform_7(%arg0: i32) -> (i32, i32) {
    %c0_i32 = arith.constant 0 : i32
    %c0_i32_0 = arith.constant 0 : i32
    %c0_i32_1 = arith.constant 0 : i32
    return %c0_i32, %c0_i32_0 : i32, i32
  }
  func.func @transform_8(%arg0: i32) -> (i32, i32) {
    %c0_i32 = arith.constant 0 : i32
    %c0_i32_0 = arith.constant 0 : i32
    %c0_i32_1 = arith.constant 0 : i32
    return %c0_i32, %c0_i32_0 : i32, i32
  }
  func.func @transform_9(%arg0: i32) -> (i32, i32) {
    %c0_i32 = arith.constant 0 : i32
    %c0_i32_0 = arith.constant 0 : i32
    return %arg0, %c0_i32 : i32, i32
  }
}

module attributes {stable_mosaic.version = 11 : i64} {
  func.func @mlp_kernel(%arg0: i32, %arg1: memref<32x16xf32, #tpu.memory_space<vmem>>, %arg2: memref<16x256xbf16, #tpu.memory_space<vmem>>, %arg3: memref<1x256xbf16, #tpu.memory_space<vmem>>, %arg4: memref<256x256xbf16, #tpu.memory_space<vmem>>, %arg5: memref<1x256xbf16, #tpu.memory_space<vmem>>, %arg6: memref<256x256xbf16, #tpu.memory_space<vmem>>, %arg7: memref<1x256xbf16, #tpu.memory_space<vmem>>, %arg8: memref<256x128xbf16, #tpu.memory_space<vmem>>, %arg9: memref<1x128xf32, #tpu.memory_space<vmem>>, %arg10: memref<32x128xbf16, #tpu.memory_space<vmem>>) attributes {dimension_semantics = [#tpu.dimension_semantics<parallel>], iteration_bounds = array<i64: 2>, scalar_prefetch = 0 : i64, scratch_operands = 0 : i64, tpu.core_type = #tpu.core_type<tc>, window_params = [{transform_indices = @transform_0, window_bounds = array<i64: 32, 16>}, {pipeline_mode = #tpu.pipeline_mode<synchronous>, transform_indices = @transform_1, window_bounds = array<i64: 16, 256>}, {pipeline_mode = #tpu.pipeline_mode<synchronous>, transform_indices = @transform_2, window_bounds = array<i64: 1, 256>}, {pipeline_mode = #tpu.pipeline_mode<synchronous>, transform_indices = @transform_3, window_bounds = array<i64: 256, 256>}, {pipeline_mode = #tpu.pipeline_mode<synchronous>, transform_indices = @transform_4, window_bounds = array<i64: 1, 256>}, {pipeline_mode = #tpu.pipeline_mode<synchronous>, transform_indices = @transform_5, window_bounds = array<i64: 256, 256>}, {pipeline_mode = #tpu.pipeline_mode<synchronous>, transform_indices = @transform_6, window_bounds = array<i64: 1, 256>}, {pipeline_mode = #tpu.pipeline_mode<synchronous>, transform_indices = @transform_7, window_bounds = array<i64: 256, 128>}, {pipeline_mode = #tpu.pipeline_mode<synchronous>, transform_indices = @transform_8, window_bounds = array<i64: 1, 128>}, {transform_indices = @transform_9, window_bounds = array<i64: 32, 128>}]} {
    %c0 = arith.constant 0 : index
    %c0_0 = arith.constant 0 : index
    %0 = vector.load %arg1[%c0, %c0_0] : memref<32x16xf32, #tpu.memory_space<vmem>>, vector<32x16xf32>
    %1 = arith.truncf %0 : vector<32x16xf32> to vector<32x16xbf16>
    %c0_1 = arith.constant 0 : index
    %c0_2 = arith.constant 0 : index
    %2 = vector.load %arg2[%c0_1, %c0_2] : memref<16x256xbf16, #tpu.memory_space<vmem>>, vector<16x256xbf16>
    %cst = arith.constant dense<0.000000e+00> : vector<32x256xf32>
    %3 = tpu.matmul %1, %2, %cst {dimension_numbers = #tpu.dot_dimension_numbers<[1], [0], [0], [1], [0, 0, 1, 1], [], []>} : vector<32x16xbf16>, vector<16x256xbf16>, vector<32x256xf32> -> vector<32x256xf32>
    %4 = arith.truncf %3 : vector<32x256xf32> to vector<32x256xbf16>
    %c0_3 = arith.constant 0 : index
    %c0_4 = arith.constant 0 : index
    %5 = vector.load %arg3[%c0_3, %c0_4] : memref<1x256xbf16, #tpu.memory_space<vmem>>, vector<1x256xbf16>
    %6 = vector.broadcast %5 : vector<1x256xbf16> to vector<32x256xbf16>
    %7 = arith.addf %4, %6 : vector<32x256xbf16>
    %cst_5 = arith.constant 0.000000e+00 : bf16
    %8 = vector.broadcast %cst_5 : bf16 to vector<32x256xbf16>
    %9 = arith.maximumf %7, %8 : vector<32x256xbf16>
    %c0_6 = arith.constant 0 : index
    %c0_7 = arith.constant 0 : index
    %10 = vector.load %arg4[%c0_6, %c0_7] : memref<256x256xbf16, #tpu.memory_space<vmem>>, vector<256x256xbf16>
    %cst_8 = arith.constant dense<0.000000e+00> : vector<32x256xf32>
    %11 = tpu.matmul %9, %10, %cst_8 {dimension_numbers = #tpu.dot_dimension_numbers<[1], [0], [0], [1], [0, 0, 1, 1], [], []>} : vector<32x256xbf16>, vector<256x256xbf16>, vector<32x256xf32> -> vector<32x256xf32>
    %12 = arith.truncf %11 : vector<32x256xf32> to vector<32x256xbf16>
    %c0_9 = arith.constant 0 : index
    %c0_10 = arith.constant 0 : index
    %13 = vector.load %arg5[%c0_9, %c0_10] : memref<1x256xbf16, #tpu.memory_space<vmem>>, vector<1x256xbf16>
    %14 = vector.broadcast %13 : vector<1x256xbf16> to vector<32x256xbf16>
    %15 = arith.addf %12, %14 : vector<32x256xbf16>
    %cst_11 = arith.constant 0.000000e+00 : bf16
    %16 = vector.broadcast %cst_11 : bf16 to vector<32x256xbf16>
    %17 = arith.maximumf %15, %16 : vector<32x256xbf16>
    %c0_12 = arith.constant 0 : index
    %c0_13 = arith.constant 0 : index
    %18 = vector.load %arg6[%c0_12, %c0_13] : memref<256x256xbf16, #tpu.memory_space<vmem>>, vector<256x256xbf16>
    %cst_14 = arith.constant dense<0.000000e+00> : vector<32x256xf32>
    %19 = tpu.matmul %17, %18, %cst_14 {dimension_numbers = #tpu.dot_dimension_numbers<[1], [0], [0], [1], [0, 0, 1, 1], [], []>} : vector<32x256xbf16>, vector<256x256xbf16>, vector<32x256xf32> -> vector<32x256xf32>
    %20 = arith.truncf %19 : vector<32x256xf32> to vector<32x256xbf16>
    %c0_15 = arith.constant 0 : index
    %c0_16 = arith.constant 0 : index
    %21 = vector.load %arg7[%c0_15, %c0_16] : memref<1x256xbf16, #tpu.memory_space<vmem>>, vector<1x256xbf16>
    %22 = vector.broadcast %21 : vector<1x256xbf16> to vector<32x256xbf16>
    %23 = arith.addf %20, %22 : vector<32x256xbf16>
    %cst_17 = arith.constant 0.000000e+00 : bf16
    %24 = vector.broadcast %cst_17 : bf16 to vector<32x256xbf16>
    %25 = arith.maximumf %23, %24 : vector<32x256xbf16>
    %c0_18 = arith.constant 0 : index
    %c0_19 = arith.constant 0 : index
    %26 = vector.load %arg8[%c0_18, %c0_19] : memref<256x128xbf16, #tpu.memory_space<vmem>>, vector<256x128xbf16>
    %cst_20 = arith.constant dense<0.000000e+00> : vector<32x128xf32>
    %27 = tpu.matmul %25, %26, %cst_20 {dimension_numbers = #tpu.dot_dimension_numbers<[1], [0], [0], [1], [0, 0, 1, 1], [], []>} : vector<32x256xbf16>, vector<256x128xbf16>, vector<32x128xf32> -> vector<32x128xf32>
    %c0_21 = arith.constant 0 : index
    %c0_22 = arith.constant 0 : index
    %28 = vector.load %arg9[%c0_21, %c0_22] : memref<1x128xf32, #tpu.memory_space<vmem>>, vector<1x128xf32>
    %29 = vector.broadcast %28 : vector<1x128xf32> to vector<32x128xf32>
    %30 = arith.addf %27, %29 : vector<32x128xf32>
    %cst_23 = arith.constant 5.000000e-01 : f32
    %31 = vector.broadcast %cst_23 : f32 to vector<32x128xf32>
    %32 = arith.mulf %31, %30 : vector<32x128xf32>
    %33 = math.tanh %32 : vector<32x128xf32>
    %cst_24 = arith.constant 1.000000e+00 : f32
    %34 = vector.broadcast %cst_24 : f32 to vector<32x128xf32>
    %35 = arith.addf %33, %34 : vector<32x128xf32>
    %cst_25 = arith.constant 5.000000e-01 : f32
    %36 = vector.broadcast %cst_25 : f32 to vector<32x128xf32>
    %37 = arith.mulf %36, %35 : vector<32x128xf32>
    %38 = arith.truncf %37 : vector<32x128xf32> to vector<32x128xbf16>
    %c0_26 = arith.constant 0 : index
    %c0_27 = arith.constant 0 : index
    %39 = vector.load %arg10[%c0_26, %c0_27] : memref<32x128xbf16, #tpu.memory_space<vmem>>, vector<32x128xbf16>
    tpu.vector_store %arg10[%c0_26, %c0_27], %38 {strides = array<i32>} : memref<32x128xbf16, #tpu.memory_space<vmem>>, vector<32x128xbf16>,
    return
  }
  func.func @transform_0(%arg0: i32) -> (i32, i32) {
    %c0_i32 = arith.constant 0 : i32
    %c0_i32_0 = arith.constant 0 : i32
    return %arg0, %c0_i32 : i32, i32
  }
  func.func @transform_1(%arg0: i32) -> (i32, i32) {
    %c0_i32 = arith.constant 0 : i32
    %c0_i32_0 = arith.constant 0 : i32
    %c0_i32_1 = arith.constant 0 : i32
    return %c0_i32, %c0_i32_0 : i32, i32
  }
  func.func @transform_2(%arg0: i32) -> (i32, i32) {
    %c0_i32 = arith.constant 0 : i32
    %c0_i32_0 = arith.constant 0 : i32
    %c0_i32_1 = arith.constant 0 : i32
    return %c0_i32, %c0_i32_0 : i32, i32
  }
  func.func @transform_3(%arg0: i32) -> (i32, i32) {
    %c0_i32 = arith.constant 0 : i32
    %c0_i32_0 = arith.constant 0 : i32
    %c0_i32_1 = arith.constant 0 : i32
    return %c0_i32, %c0_i32_0 : i32, i32
  }
  func.func @transform_4(%arg0: i32) -> (i32, i32) {
    %c0_i32 = arith.constant 0 : i32
    %c0_i32_0 = arith.constant 0 : i32
    %c0_i32_1 = arith.constant 0 : i32
    return %c0_i32, %c0_i32_0 : i32, i32
  }
  func.func @transform_5(%arg0: i32) -> (i32, i32) {
    %c0_i32 = arith.constant 0 : i32
    %c0_i32_0 = arith.constant 0 : i32
    %c0_i32_1 = arith.constant 0 : i32
    return %c0_i32, %c0_i32_0 : i32, i32
  }
  func.func @transform_6(%arg0: i32) -> (i32, i32) {
    %c0_i32 = arith.constant 0 : i32
    %c0_i32_0 = arith.constant 0 : i32
    %c0_i32_1 = arith.constant 0 : i32
    return %c0_i32, %c0_i32_0 : i32, i32
  }
  func.func @transform_7(%arg0: i32) -> (i32, i32) {
    %c0_i32 = arith.constant 0 : i32
    %c0_i32_0 = arith.constant 0 : i32
    %c0_i32_1 = arith.constant 0 : i32
    return %c0_i32, %c0_i32_0 : i32, i32
  }
  func.func @transform_8(%arg0: i32) -> (i32, i32) {
    %c0_i32 = arith.constant 0 : i32
    %c0_i32_0 = arith.constant 0 : i32
    %c0_i32_1 = arith.constant 0 : i32
    return %c0_i32, %c0_i32_0 : i32, i32
  }
  func.func @transform_9(%arg0: i32) -> (i32, i32) {
    %c0_i32 = arith.constant 0 : i32
    %c0_i32_0 = arith.constant 0 : i32
    return %arg0, %c0_i32 : i32, i32
  }
}

</mosaic_0001>

<llo_original>
// kernel: tpu_custom_call.1
$region0: #{tpu_custom_call.1}
  #allocation0 [shape = 'u32[]', space=smem, size = 0x4, offset = 0x4, fixed_abs, tag = 'smem constant byte address 0x4 - core index']
  #allocation1 [shape = 'u32[144,128]{1,0:T(1,128)}', space=vmem, size = 0x12000, scoped, tag = 'internal scratch']
  %s0 = inlined_call_operand.vmem [shape: f32[64,16], index: 0, kind: input, shape index: {}]
  %s1 = inlined_call_operand.vmem [shape: bf16[16,256], index: 1, kind: input, shape index: {}]
  %s2 = inlined_call_operand.vmem [shape: bf16[1,256], index: 2, kind: input, shape index: {}]
  %s3 = inlined_call_operand.hbm [shape: bf16[256,256], index: 3, kind: input, shape index: {}]
  %s4 = inlined_call_operand.vmem [shape: bf16[1,256], index: 4, kind: input, shape index: {}]
  %s5 = inlined_call_operand.hbm [shape: bf16[256,256], index: 5, kind: input, shape index: {}]
  %s6 = inlined_call_operand.vmem [shape: bf16[1,256], index: 6, kind: input, shape index: {}]
  %s7 = inlined_call_operand.hbm [shape: bf16[256,128], index: 7, kind: input, shape index: {}]
  %s8 = inlined_call_operand.vmem [shape: f32[1,128], index: 8, kind: input, shape index: {}]
  %s9 = inlined_call_operand.hbm [shape: bf16[64,128], index: 9, kind: output, shape index: {}]
  %s10 = sld [smem:[#allocation0]]
  $region81: #{tpu_custom_call.1} parent=0
    _
  %s12 = ssub.s32 1, %s10
  %s13 = scalar_select 0, %s12, %s10
  $region1: #{tpu_custom_call.1} parent=0
    #allocation2 [shape = 'u8[131072]{0}', space=vmem, size = 0x20000, scoped, tag = 'input window, operand 3, single buffered']
    #allocation3 [shape = 's32[2]{0}', space=sflag, size = 0x8, scoped, tag = 'scoped memory for tpu_custom_call.1']
    #allocation4 [shape = 's32[2]{0}', space=sflag, size = 0x8, scoped, tag = 'scoped memory for tpu_custom_call.1']
    #allocation5 [shape = 'u8[131072]{0}', space=vmem, size = 0x20000, scoped, tag = 'input window, operand 5, single buffered']
    #allocation6 [shape = 's32[1]{0}', space=sflag, size = 0x4, scoped, tag = 'scoped memory for tpu_custom_call.1']
    #allocation7 [shape = 'u8[65536]{0}', space=vmem, size = 0x10000, scoped, tag = 'input window, operand 7, single buffered']
    #allocation8 [shape = 'u8[16384]{0}', space=vmem, size = 0x4000, scoped, tag = 'output window, operand 0']
    %14 = vsyncpa [#allocation3], 0
    %15 = vsyncpa [#allocation6], 0
    %16 = vsyncpa [#allocation4], 0
    %s17 = scalar_lea.sflag [#allocation4], 1
    %18 = vsyncpa %s17, 0
    loop: start=0, step=1, limit=4
    $region2: #{tpu_custom_call.1} parent=1 // loop_pre_header
      _
    $region3: #{tpu_custom_call.1} parent=1 // loop_header
      %s20 = sphi 0, %s24
      %p21 = scmp.ge.s32.totalorder %s20, 4
      %s30 = sphi 0, %s32
      %s33 = sphi 0, %s30
      %s34 = sphi 0, %s33
      %s50 = sphi 0, %s34
      %s54 = sphi 0, %s54
      %s56 = sphi 0, %s54
      %s57 = sphi 0, %s56
      %s71 = sphi 0, %s57
      %s75 = sphi 0, %s75
      %s77 = sphi 0, %s75
      %s78 = sphi 0, %s77
      %s92 = sphi 0, %s78
      %s96 = sphi 0, %s96
      %s98 = sphi 0, %s96
      %s99 = sphi 0, %s98
      %s113 = sphi 0, %s99
      %s117 = sphi 0, %s117
      %s119 = sphi 0, %s117
      %s120 = sphi 0, %s119
      %s134 = sphi 0, %s120
      %s138 = sphi 0, %s138
      %s140 = sphi 0, %s138
      %s141 = sphi 0, %s140
      %s155 = sphi 0, %s141
      %s159 = sphi 0, %s159
      %s161 = sphi 0, %s159
      %s162 = sphi 0, %s161
      %s176 = sphi 0, %s162
      %s180 = sphi 0, %s180
      %s182 = sphi 0, %s180
      %s183 = sphi 0, %s182
      %s197 = sphi 0, %s183
      %s201 = sphi 0, %s201
      %s203 = sphi 0, %s201
      %s204 = sphi 0, %s203
      %s218 = sphi 0, %s204
      %s224 = sphi 0, %s226
      %s227 = sphi 0, %s224
      %s228 = sphi 0, %s227
      %s244 = sphi 0, %s228
    $region4: #{tpu_custom_call.1} parent=1 // loop_header_branch
      %23 = sbr.rel (%p21) target = $region8
    $region5: #{tpu_custom_call.1} parent=1 // loop_body
      %s25 = ssub.s32 %s20, 1
      %s26 = ssub.s32 %s20, 2
      %s27 = sadd.s32 %s20, 1
      %s28 = ssub.s32 %s20, %s27
      %p29 = scmp.eq.s32.totalorder %s28, 0
      %s31 = sadd.s32 %s30, 1
      %s32 = scalar_select %p29, %s30, %s31
      %p35 = pneg %p29
      %p36 = scmp.eq.s32.totalorder %s20, 1
      %p37 = por %p35, %p36
      %p38 = scmp.ne.s32.totalorder %s30, %s33
      %p39 = scmp.eq.s32.totalorder %s20, 0
      %p40 = por %p38, %p39
      %p41 = scmp.ne.s32.totalorder %s30, %s33
      %p42 = scmp.eq.s32.totalorder %s25, 1
      %p43 = por %p41, %p42
      %p44 = scmp.ne.s32.totalorder %s33, %s34
      %p45 = scmp.eq.s32.totalorder %s25, 0
      %p46 = por %p44, %p45
      %p47 = scmp.ne.s32.totalorder %s33, %s34
      %p48 = scmp.eq.s32.totalorder %s26, 1
      %p49 = por %p47, %p48
      %p51 = scmp.ne.s32.totalorder %s34, %s50
      %p52 = scmp.eq.s32.totalorder %s26, 0
      %p53 = por %p51, %p52
      %s55 = sadd.s32 %s54, 1
      %p58 = scmp.eq.s32.totalorder %s20, 1
      %p59 = scmp.ne.s32.totalorder %s54, %s56
      %p60 = scmp.eq.s32.totalorder %s20, 0
      %p61 = por %p59, %p60
      %p62 = scmp.ne.s32.totalorder %s54, %s56
      %p63 = scmp.eq.s32.totalorder %s25, 1
      %p64 = por %p62, %p63
      %p65 = scmp.ne.s32.totalorder %s56, %s57
      %p66 = scmp.eq.s32.totalorder %s25, 0
      %p67 = por %p65, %p66
      %p68 = scmp.ne.s32.totalorder %s56, %s57
      %p69 = scmp.eq.s32.totalorder %s26, 1
      %p70 = por %p68, %p69
      %p72 = scmp.ne.s32.totalorder %s57, %s71
      %p73 = scmp.eq.s32.totalorder %s26, 0
      %p74 = por %p72, %p73
      %s76 = sadd.s32 %s75, 1
      %p79 = scmp.eq.s32.totalorder %s20, 1
      %p80 = scmp.ne.s32.totalorder %s75, %s77
      %p81 = scmp.eq.s32.totalorder %s20, 0
      %p82 = por %p80, %p81
      %p83 = scmp.ne.s32.totalorder %s75, %s77
      %p84 = scmp.eq.s32.totalorder %s25, 1
      %p85 = por %p83, %p84
      %p86 = scmp.ne.s32.totalorder %s77, %s78
      %p87 = scmp.eq.s32.totalorder %s25, 0
      %p88 = por %p86, %p87
      %p89 = scmp.ne.s32.totalorder %s77, %s78
      %p90 = scmp.eq.s32.totalorder %s26, 1
      %p91 = por %p89, %p90
      %p93 = scmp.ne.s32.totalorder %s78, %s92
      %p94 = scmp.eq.s32.totalorder %s26, 0
      %p95 = por %p93, %p94
      %s97 = sadd.s32 %s96, 1
      %p100 = scmp.eq.s32.totalorder %s20, 1
      %p101 = scmp.ne.s32.totalorder %s96, %s98
      %p102 = scmp.eq.s32.totalorder %s20, 0
      %p103 = por %p101, %p102
      %p104 = scmp.ne.s32.totalorder %s96, %s98
      %p105 = scmp.eq.s32.totalorder %s25, 1
      %p106 = por %p104, %p105
      %p107 = scmp.ne.s32.totalorder %s98, %s99
      %p108 = scmp.eq.s32.totalorder %s25, 0
      %p109 = por %p107, %p108
      %p110 = scmp.ne.s32.totalorder %s98, %s99
      %p111 = scmp.eq.s32.totalorder %s26, 1
      %p112 = por %p110, %p111
      %p114 = scmp.ne.s32.totalorder %s99, %s113
      %p115 = scmp.eq.s32.totalorder %s26, 0
      %p116 = por %p114, %p115
      %s118 = sadd.s32 %s117, 1
      %p121 = scmp.eq.s32.totalorder %s20, 1
      %p122 = scmp.ne.s32.totalorder %s117, %s119
      %p123 = scmp.eq.s32.totalorder %s20, 0
      %p124 = por %p122, %p123
      %p125 = scmp.ne.s32.totalorder %s117, %s119
      %p126 = scmp.eq.s32.totalorder %s25, 1
      %p127 = por %p125, %p126
      %p128 = scmp.ne.s32.totalorder %s119, %s120
      %p129 = scmp.eq.s32.totalorder %s25, 0
      %p130 = por %p128, %p129
      %p131 = scmp.ne.s32.totalorder %s119, %s120
      %p132 = scmp.eq.s32.totalorder %s26, 1
      %p133 = por %p131, %p132
      %p135 = scmp.ne.s32.totalorder %s120, %s134
      %p136 = scmp.eq.s32.totalorder %s26, 0
      %p137 = por %p135, %p136
      %s139 = sadd.s32 %s138, 1
      %p142 = scmp.eq.s32.totalorder %s20, 1
      %p143 = scmp.ne.s32.totalorder %s138, %s140
      %p144 = scmp.eq.s32.totalorder %s20, 0
      %p145 = por %p143, %p144
      %p146 = scmp.ne.s32.totalorder %s138, %s140
      %p147 = scmp.eq.s32.totalorder %s25, 1
      %p148 = por %p146, %p147
      %p149 = scmp.ne.s32.totalorder %s140, %s141
      %p150 = scmp.eq.s32.totalorder %s25, 0
      %p151 = por %p149, %p150
      %p152 = scmp.ne.s32.totalorder %s140, %s141
      %p153 = scmp.eq.s32.totalorder %s26, 1
      %p154 = por %p152, %p153
      %p156 = scmp.ne.s32.totalorder %s141, %s155
      %p157 = scmp.eq.s32.totalorder %s26, 0
      %p158 = por %p156, %p157
      %s160 = sadd.s32 %s159, 1
      %p163 = scmp.eq.s32.totalorder %s20, 1
      %p164 = scmp.ne.s32.totalorder %s159, %s161
      %p165 = scmp.eq.s32.totalorder %s20, 0
      %p166 = por %p164, %p165
      %p167 = scmp.ne.s32.totalorder %s159, %s161
      %p168 = scmp.eq.s32.totalorder %s25, 1
      %p169 = por %p167, %p168
      %p170 = scmp.ne.s32.totalorder %s161, %s162
      %p171 = scmp.eq.s32.totalorder %s25, 0
      %p172 = por %p170, %p171
      %p173 = scmp.ne.s32.totalorder %s161, %s162
      %p174 = scmp.eq.s32.totalorder %s26, 1
      %p175 = por %p173, %p174
      %p177 = scmp.ne.s32.totalorder %s162, %s176
      %p178 = scmp.eq.s32.totalorder %s26, 0
      %p179 = por %p177, %p178
      %s181 = sadd.s32 %s180, 1
      %p184 = scmp.eq.s32.totalorder %s20, 1
      %p185 = scmp.ne.s32.totalorder %s180, %s182
      %p186 = scmp.eq.s32.totalorder %s20, 0
      %p187 = por %p185, %p186
      %p188 = scmp.ne.s32.totalorder %s180, %s182
      %p189 = scmp.eq.s32.totalorder %s25, 1
      %p190 = por %p188, %p189
      %p191 = scmp.ne.s32.totalorder %s182, %s183
      %p192 = scmp.eq.s32.totalorder %s25, 0
      %p193 = por %p191, %p192
      %p194 = scmp.ne.s32.totalorder %s182, %s183
      %p195 = scmp.eq.s32.totalorder %s26, 1
      %p196 = por %p194, %p195
      %p198 = scmp.ne.s32.totalorder %s183, %s197
      %p199 = scmp.eq.s32.totalorder %s26, 0
      %p200 = por %p198, %p199
      %s202 = sadd.s32 %s201, 1
      %p205 = scmp.eq.s32.totalorder %s20, 1
      %p206 = scmp.ne.s32.totalorder %s201, %s203
      %p207 = scmp.eq.s32.totalorder %s20, 0
      %p208 = por %p206, %p207
      %p209 = scmp.ne.s32.totalorder %s201, %s203
      %p210 = scmp.eq.s32.totalorder %s25, 1
      %p211 = por %p209, %p210
      %p212 = scmp.ne.s32.totalorder %s203, %s204
      %p213 = scmp.eq.s32.totalorder %s25, 0
      %p214 = por %p212, %p213
      %p215 = scmp.ne.s32.totalorder %s203, %s204
      %p216 = scmp.eq.s32.totalorder %s26, 1
      %p217 = por %p215, %p216
      %p219 = scmp.ne.s32.totalorder %s204, %s218
      %p220 = scmp.eq.s32.totalorder %s26, 0
      %p221 = por %p219, %p220
      %s222 = ssub.s32 %s20, %s27
      %p223 = scmp.eq.s32.totalorder %s222, 0
      %s225 = sadd.s32 %s224, 1
      %s226 = scalar_select %p223, %s224, %s225
      %p229 = pneg %p223
      %p230 = scmp.eq.s32.totalorder %s20, 1
      %p231 = por %p229, %p230
      %p232 = scmp.ne.s32.totalorder %s224, %s227
      %p233 = scmp.eq.s32.totalorder %s20, 0
      %p234 = por %p232, %p233
      %p235 = scmp.ne.s32.totalorder %s224, %s227
      %p236 = scmp.eq.s32.totalorder %s25, 1
      %p237 = por %p235, %p236
      %p238 = scmp.ne.s32.totalorder %s227, %s228
      %p239 = scmp.eq.s32.totalorder %s25, 0
      %p240 = por %p238, %p239
      %p241 = scmp.ne.s32.totalorder %s227, %s228
      %p242 = scmp.eq.s32.totalorder %s26, 1
      %p243 = por %p241, %p242
      %p245 = scmp.ne.s32.totalorder %s228, %s244
      %p246 = scmp.eq.s32.totalorder %s26, 0
      %p247 = por %p245, %p246
      %p248 = scmp.le.s32.totalorder 1, %s20
      %p249 = scmp.lt.s32.totalorder %s20, 3
      %p250 = pnand %p248, %p249
      %p251 = pneg %p250
      // Predicated region
      $region9: #{tpu_custom_call.1} parent=5 // pred_check
        _
      $region10: #{tpu_custom_call.1} parent=5 // pred_check_branch
        %253 = sbr.rel (%p250) target = $region12
      $region11: #{tpu_custom_call.1} parent=5 // pred_region
        %s254 = ssub.s32 %s20, 1
        // Predicated region
        $region13: #{tpu_custom_call.1} parent=11 // pred_check
          %p255 = pneg %p67
        $region14: #{tpu_custom_call.1} parent=11 // pred_check_branch
          %257 = sbr.rel (%p255) target = $region16
        $region15: #{tpu_custom_call.1} parent=11 // pred_region
          _
        $region16: #{tpu_custom_call.1} parent=11 // pred_fallthru
          _
        // Predicated region
        $region17: #{tpu_custom_call.1} parent=11 // pred_check
          %p258 = pneg %p88
        $region18: #{tpu_custom_call.1} parent=11 // pred_check_branch
          %260 = sbr.rel (%p258) target = $region20
        $region19: #{tpu_custom_call.1} parent=11 // pred_region
          _
        $region20: #{tpu_custom_call.1} parent=11 // pred_fallthru
          _
        // Predicated region
        $region21: #{tpu_custom_call.1} parent=11 // pred_check
          %p261 = pneg %p109
        $region22: #{tpu_custom_call.1} parent=11 // pred_check_branch
          %263 = sbr.rel (%p261) target = $region24
        $region23: #{tpu_custom_call.1} parent=11 // pred_region
          %s265 = ssub.s32 4096, 4096
          %266 = vsyncadd [#allocation3], %s265
          %s267 = sshll.u32 [#allocation2], 4
          %s268 = int_to_ptr.vmem [resolvable:$true] %s267
          %273 = dma.hbm_to_vmem [thread:$0]  %s3, 4096, %s268, [#allocation3], 128, 128, 8
        $region24: #{tpu_custom_call.1} parent=11 // pred_fallthru
          _
        // Predicated region
        $region25: #{tpu_custom_call.1} parent=11 // pred_check
          %p274 = pneg %p130
        $region26: #{tpu_custom_call.1} parent=11 // pred_check_branch
          %276 = sbr.rel (%p274) target = $region28
        $region27: #{tpu_custom_call.1} parent=11 // pred_region
          _
        $region28: #{tpu_custom_call.1} parent=11 // pred_fallthru
          _
        // Predicated region
        $region29: #{tpu_custom_call.1} parent=11 // pred_check
          %p277 = pneg %p151
        $region30: #{tpu_custom_call.1} parent=11 // pred_check_branch
          %279 = sbr.rel (%p277) target = $region32
        $region31: #{tpu_custom_call.1} parent=11 // pred_region
          %s281 = ssub.s32 4096, 4096
          %282 = vsyncadd [#allocation6], %s281
          %s283 = sshll.u32 [#allocation5], 4
          %s284 = int_to_ptr.vmem [resolvable:$true] %s283
          %289 = dma.hbm_to_vmem [thread:$0]  %s5, 4096, %s284, [#allocation6], 128, 128, 8
        $region32: #{tpu_custom_call.1} parent=11 // pred_fallthru
          _
        // Predicated region
        $region33: #{tpu_custom_call.1} parent=11 // pred_check
          %p290 = pneg %p172
        $region34: #{tpu_custom_call.1} parent=11 // pred_check_branch
          %292 = sbr.rel (%p290) target = $region36
        $region35: #{tpu_custom_call.1} parent=11 // pred_region
          _
        $region36: #{tpu_custom_call.1} parent=11 // pred_fallthru
          _
        // Predicated region
        $region37: #{tpu_custom_call.1} parent=11 // pred_check
          %p293 = pneg %p193
        $region38: #{tpu_custom_call.1} parent=11 // pred_check_branch
          %295 = sbr.rel (%p293) target = $region40
        $region39: #{tpu_custom_call.1} parent=11 // pred_region
          %s297 = ssub.s32 2048, 2048
          %298 = vsyncadd [#allocation6], %s297
          %s299 = sshll.u32 [#allocation7], 4
          %s300 = int_to_ptr.vmem [resolvable:$true] %s299
          %305 = dma.hbm_to_vmem [thread:$0]  %s7, 2048, %s300, [#allocation6], 64, 64, 4
        $region40: #{tpu_custom_call.1} parent=11 // pred_fallthru
          _
        // Predicated region
        $region41: #{tpu_custom_call.1} parent=11 // pred_check
          %p306 = pneg %p214
        $region42: #{tpu_custom_call.1} parent=11 // pred_check_branch
          %308 = sbr.rel (%p306) target = $region44
        $region43: #{tpu_custom_call.1} parent=11 // pred_region
          _
        $region44: #{tpu_custom_call.1} parent=11 // pred_fallthru
          _
      $region12: #{tpu_custom_call.1} parent=5 // pred_fallthru
        _
      %p309 = scmp.lt.s32.totalorder %s20, 2
      // Predicated region
      $region45: #{tpu_custom_call.1} parent=5 // pred_check
        %p310 = pneg %p309
      $region46: #{tpu_custom_call.1} parent=5 // pred_check_branch
        %312 = sbr.rel (%p310) target = $region48
      $region47: #{tpu_custom_call.1} parent=5 // pred_region
        // Predicated region
        $region49: #{tpu_custom_call.1} parent=47 // pred_check
          %p313 = pneg %p40
        $region50: #{tpu_custom_call.1} parent=47 // pred_check_branch
          %315 = sbr.rel (%p313) target = $region52
        $region51: #{tpu_custom_call.1} parent=47 // pred_region
          %s316 = smul.u32 4, %s20
          %p317 = scmp.lt.s32.totalorder %s316, 7
          %s318 = scalar_select %p317, %s316, 7
          %s319 = smul.addr %s318, 8
          %s320 = scalar_lea.vmem %s0, %s319
          %s321 = smul.u32 4, %s20
        $region52: #{tpu_custom_call.1} parent=47 // pred_fallthru
          _
      $region48: #{tpu_custom_call.1} parent=5 // pred_fallthru
        _
      %p322 = scmp.le.s32.totalorder 1, %s20
      %p323 = scmp.lt.s32.totalorder %s20, 3
      %p324 = pnand %p322, %p323
      %p325 = pneg %p324
      // Predicated region
      $region53: #{tpu_custom_call.1} parent=5 // pred_check
        _
      $region54: #{tpu_custom_call.1} parent=5 // pred_check_branch
        %327 = sbr.rel (%p324) target = $region56
      $region55: #{tpu_custom_call.1} parent=5 // pred_region
        %s328 = ssub.s32 %s20, 1
        // Predicated region
        $region57: #{tpu_custom_call.1} parent=55 // pred_check
          %p329 = pneg %p109
        $region58: #{tpu_custom_call.1} parent=55 // pred_check_branch
          %331 = sbr.rel (%p329) target = $region60
        $region59: #{tpu_custom_call.1} parent=55 // pred_region
          %332 = dma.done [#allocation3], 4096
        $region60: #{tpu_custom_call.1} parent=55 // pred_fallthru
          _
        // Predicated region
        $region61: #{tpu_custom_call.1} parent=55 // pred_check
          %p333 = pneg %p151
        $region62: #{tpu_custom_call.1} parent=55 // pred_check_branch
          %335 = sbr.rel (%p333) target = $region64
        $region63: #{tpu_custom_call.1} parent=55 // pred_region
          %336 = dma.done [#allocation6], 4096
        $region64: #{tpu_custom_call.1} parent=55 // pred_fallthru
          _
        // Predicated region
        $region65: #{tpu_custom_call.1} parent=55 // pred_check
          %p337 = pneg %p193
        $region66: #{tpu_custom_call.1} parent=55 // pred_check_branch
          %339 = sbr.rel (%p337) target = $region68
        $region67: #{tpu_custom_call.1} parent=55 // pred_region
          %340 = dma.done [#allocation6], 2048
        $region68: #{tpu_custom_call.1} parent=55 // pred_fallthru
          _
        %s341 = smul.u32 4, %s25
        %p342 = scmp.lt.s32.totalorder %s341, 7
        %s343 = scalar_select %p342, %s341, 7
        %s344 = smul.addr %s343, 8
        %s345 = scalar_lea.vmem %s0, %s344
        %p346 = pneg %p46
        %p347 = pneg %p43
        %p348 = pneg %p67
        %p349 = pneg %p64
        %p350 = pneg %p88
        %p351 = pneg %p85
        %p352 = pneg %p109
        %p353 = pneg %p106
        %p354 = pneg %p130
        %p355 = pneg %p127
        %p356 = pneg %p151
        %p357 = pneg %p148
        %p358 = pneg %p172
        %p359 = pneg %p169
        %p360 = pneg %p193
        %p361 = pneg %p190
        %p362 = pneg %p214
        %p363 = pneg %p211
        %p364 = pneg %p240
        %p365 = pneg %p237
        %s366 = sand.u32 %s227, 1
        %s367 = scalar_lea.sflag [#allocation4], %s366
        %s368 = sand.u32 %s227, 1
        %s369 = smul.addr %s368, 16
        %s370 = scalar_lea.vmem [#allocation8], %s369
        %s371 = smul.u32 4, %s25
        %p372 = scmp.lt.s32.totalorder %s371, 7
        %s373 = scalar_select %p372, %s371, 7
        %s374 = smul.addr %s373, 8
        %s375 = scalar_lea.vmem %s0, %s374
        %s376 = smul.u32 4, %s25
        %s377 = smul.u32 4, %s25
        %v379 = vld [vmem:[%s375] sm:$0xff]
        %v380 = vld [vmem:[%s375 + $0x8] sm:$0xff]
        %v381 = vld [vmem:[%s375 + $0x10] sm:$0xff]
        %v382 = vld [vmem:[%s375 + $0x18] sm:$0xff]
        %v383 = vpack.c.bf16 %v380, %v379
        %v384 = vpack.c.bf16 %v382, %v381
        %v385 = vld [vmem:[%s1] sm:$0xff]
        %v386 = vld [vmem:[%s1 + $0x8] sm:$0xff]
        %v389 = vunpack.c.l.b16 %v385
        %v390 = vunpack.c.h.b16 %v385
        %v391 = vunpack.c.l.b16 %v386
        %v392 = vunpack.c.h.b16 %v386
        %v393 = vpack.c.b16 %v391, %v389
        %v394 = vpack.c.b16 %v392, %v390
        %vm397 = vcmask 130048
        %v399 = vsel %vm397, %v383, 0
        %v402 = vsel %vm397, %v384, 0
        %404 = vmatprep.subr.bf16.mxu0 %v394
        %405 = vmatpush1.bf16.msra.mxu0 %v393
        %406 = vmatprep.subr.bf16.mxu0 0
        %407 = vmatpush1.bf16.msra.mxu0 0
        %408 = vmatprep.subr.bf16.mxu0 0
        %409 = vmatpush1.bf16.msra.mxu0 0
        %410 = vmatprep.subr.bf16.mxu0 0
        %411 = vmatpush1.bf16.msra.mxu0 0
        %412 = vmatprep.subr.bf16.mxu0 0
        %413 = vmatpush1.bf16.msra.mxu0 0
        %414 = vmatprep.subr.bf16.mxu0 0
        %415 = vmatpush1.bf16.msra.mxu0 0
        %416 = vmatprep.subr.bf16.mxu0 0
        %417 = vmatpush1.bf16.msra.mxu0 0
        %418 = vmatprep.subr.bf16.mxu0 0
        %419 = vmatpush1.bf16.msra.mxu0 0
        %420 = vmatprep.subr.bf16.mxu0 0
        %421 = vmatpush1.bf16.msra.mxu0 0
        %422 = vmatprep.subr.bf16.mxu0 0
        %423 = vmatpush1.bf16.msra.mxu0 0
        %424 = vmatprep.subr.bf16.mxu0 0
        %425 = vmatpush1.bf16.msra.mxu0 0
        %426 = vmatprep.subr.bf16.mxu0 0
        %427 = vmatpush1.bf16.msra.mxu0 0
        %428 = vmatprep.subr.bf16.mxu0 0
        %429 = vmatpush1.bf16.msra.mxu0 0
        %430 = vmatprep.subr.bf16.mxu0 0
        %431 = vmatpush1.bf16.msra.mxu0 0
        %432 = vmatprep.subr.bf16.mxu0 0
        %433 = vmatpush1.bf16.msra.mxu0 0
        %434 = vmatprep.subr.bf16.mxu0 0
        %435 = vmatpush1.bf16.msra.mxu0 0
        %436 = vmatprep.mubr.bf16.mxu0 0
        %437 = vmatmul.mubr.bf16.gmra.mrb[0].mxu0 %v399
        %v438 = vpop.f32.mrb[0].mxu0
        %v439 = vadd.f32 0.0, %v438
        %v440 = vpop.f32.mrb[0].mxu0
        %v441 = vadd.f32 0.0, %v440
        %v442 = vpop.f32.mrb[0].mxu0
        %v443 = vadd.f32 0.0, %v442
        %v444 = vpop.f32.mrb[0].mxu0
        %v445 = vadd.f32 0.0, %v444
        %446 = vmatprep.mubr.bf16.mxu0 0
        %447 = vmatmul.mubr.bf16.gmra.mrb[0].mxu0 %v402
        %v448 = vpop.f32.mrb[0].mxu0
        %v449 = vadd.f32 0.0, %v448
        %v450 = vpop.f32.mrb[0].mxu0
        %v451 = vadd.f32 0.0, %v450
        %v452 = vpop.f32.mrb[0].mxu0
        %v453 = vadd.f32 0.0, %v452
        %v454 = vpop.f32.mrb[0].mxu0
        %v455 = vadd.f32 0.0, %v454
        %456 = vdwg.mxu0
        %v457 = vpack.c.bf16 %v443, %v439
        %v458 = vpack.c.bf16 %v445, %v441
        %v459 = vpack.c.bf16 %v453, %v449
        %v460 = vpack.c.bf16 %v455, %v451
        %v461 = vld [vmem:[%s2] sm:$0x3]
        %v464 = vunpack.c.l.s4 1966171168
        %v465 = vunpack.c.0.s8 %v464
        %v466 = vlaneseq
        %v467 = vshrl.u32 %v466, 7
        %v468 = vsub.s32 %v465, %v467
        %v469 = vrot.slane %v461, %v468
        %v470 = vcombine.high %v469, %v469
        %v472 = vunpack.c.l.s4 1966171168
        %v473 = vunpack.c.0.s8 %v472
        %v474 = vlaneseq
        %v475 = vshrl.u32 %v474, 7
        %v476 = vsub.s32 %v473, %v475
        %v477 = vrot.slane %v469, %v476
        %v479 = vunpack.c.l.s4 1966171168
        %v480 = vunpack.c.0.s8 %v479
        %v481 = vlaneseq
        %v482 = vshrl.u32 %v481, 7
        %v483 = vsub.s32 %v480, %v482
        %v484 = vrot.slane %v470, %v483
        %v486 = vpack.i.b16 %v477, %v477
        %v488 = vlaneseq
        %v489 = vshrl.u32 %v488, 7
        %v490 = vsub.s32 0, %v489
        %v491 = vrot.slane %v486, %v490
        %v493 = vpack.i.b16 %v484, %v484
        %v495 = vlaneseq
        %v496 = vshrl.u32 %v495, 7
        %v497 = vsub.s32 0, %v496
        %v498 = vrot.slane %v493, %v497
        %v499 = vadd.bf16 %v457, %v491
        %v500 = vadd.bf16 %v458, %v498
        %v501 = vadd.bf16 %v459, %v491
        %v502 = vadd.bf16 %v460, %v498
        %v503 = vmax.bf16 %v499, 0
        %v504 = vmax.bf16 %v500, 0
        %v505 = vmax.bf16 %v501, 0
        %v506 = vmax.bf16 %v502, 0
        %v507 = vld [vmem:[#allocation2] sm:$0xff]
        %v508 = vld [vmem:[#allocation2 + $0x8] sm:$0xff]
        %v509 = vld [vmem:[#allocation2 + $0x10] sm:$0xff]
        %v510 = vld [vmem:[#allocation2 + $0x18] sm:$0xff]
        %v511 = vld [vmem:[#allocation2 + $0x20] sm:$0xff]
        %v512 = vld [vmem:[#allocation2 + $0x28] sm:$0xff]
        %v513 = vld [vmem:[#allocation2 + $0x30] sm:$0xff]
        %v514 = vld [vmem:[#allocation2 + $0x38] sm:$0xff]
        %v515 = vld [vmem:[#allocation2 + $0x40] sm:$0xff]
        %v516 = vld [vmem:[#allocation2 + $0x48] sm:$0xff]
        %v517 = vld [vmem:[#allocation2 + $0x50] sm:$0xff]
        %v518 = vld [vmem:[#allocation2 + $0x58] sm:$0xff]
        %v519 = vld [vmem:[#allocation2 + $0x60] sm:$0xff]
        %v520 = vld [vmem:[#allocation2 + $0x68] sm:$0xff]
        %v521 = vld [vmem:[#allocation2 + $0x70] sm:$0xff]
        %v522 = vld [vmem:[#allocation2 + $0x78] sm:$0xff]
        %v523 = vld [vmem:[#allocation2 + $0x80] sm:$0xff]
        %v524 = vld [vmem:[#allocation2 + $0x88] sm:$0xff]
        %v525 = vld [vmem:[#allocation2 + $0x90] sm:$0xff]
        %v526 = vld [vmem:[#allocation2 + $0x98] sm:$0xff]
        %v527 = vld [vmem:[#allocation2 + $0xa0] sm:$0xff]
        %v528 = vld [vmem:[#allocation2 + $0xa8] sm:$0xff]
        %v529 = vld [vmem:[#allocation2 + $0xb0] sm:$0xff]
        %v530 = vld [vmem:[#allocation2 + $0xb8] sm:$0xff]
        %v531 = vld [vmem:[#allocation2 + $0xc0] sm:$0xff]
        %v532 = vld [vmem:[#allocation2 + $0xc8] sm:$0xff]
        %v533 = vld [vmem:[#allocation2 + $0xd0] sm:$0xff]
        %v534 = vld [vmem:[#allocation2 + $0xd8] sm:$0xff]
        %v535 = vld [vmem:[#allocation2 + $0xe0] sm:$0xff]
        %v536 = vld [vmem:[#allocation2 + $0xe8] sm:$0xff]
        %v537 = vld [vmem:[#allocation2 + $0xf0] sm:$0xff]
        %v538 = vld [vmem:[#allocation2 + $0xf8] sm:$0xff]
        %v571 = vunpack.c.l.b16 %v507
        %v572 = vunpack.c.h.b16 %v507
        %v573 = vunpack.c.l.b16 %v508
        %v574 = vunpack.c.h.b16 %v508
        %v575 = vunpack.c.l.b16 %v509
        %v576 = vunpack.c.h.b16 %v509
        %v577 = vunpack.c.l.b16 %v510
        %v578 = vunpack.c.h.b16 %v510
        %v579 = vunpack.c.l.b16 %v511
        %v580 = vunpack.c.h.b16 %v511
        %v581 = vunpack.c.l.b16 %v512
        %v582 = vunpack.c.h.b16 %v512
        %v583 = vunpack.c.l.b16 %v513
        %v584 = vunpack.c.h.b16 %v513
        %v585 = vunpack.c.l.b16 %v514
        %v586 = vunpack.c.h.b16 %v514
        %v587 = vunpack.c.l.b16 %v515
        %v588 = vunpack.c.h.b16 %v515
        %v589 = vunpack.c.l.b16 %v516
        %v590 = vunpack.c.h.b16 %v516
        %v591 = vunpack.c.l.b16 %v517
        %v592 = vunpack.c.h.b16 %v517
        %v593 = vunpack.c.l.b16 %v518
        %v594 = vunpack.c.h.b16 %v518
        %v595 = vunpack.c.l.b16 %v519
        %v596 = vunpack.c.h.b16 %v519
        %v597 = vunpack.c.l.b16 %v520
        %v598 = vunpack.c.h.b16 %v520
        %v599 = vunpack.c.l.b16 %v521
        %v600 = vunpack.c.h.b16 %v521
        %v601 = vunpack.c.l.b16 %v522
        %v602 = vunpack.c.h.b16 %v522
        %v603 = vunpack.c.l.b16 %v523
        %v604 = vunpack.c.h.b16 %v523
        %v605 = vunpack.c.l.b16 %v524
        %v606 = vunpack.c.h.b16 %v524
        %v607 = vunpack.c.l.b16 %v525
        %v608 = vunpack.c.h.b16 %v525
        %v609 = vunpack.c.l.b16 %v526
        %v610 = vunpack.c.h.b16 %v526
        %v611 = vunpack.c.l.b16 %v527
        %v612 = vunpack.c.h.b16 %v527
        %v613 = vunpack.c.l.b16 %v528
        %v614 = vunpack.c.h.b16 %v528
        %v615 = vunpack.c.l.b16 %v529
        %v616 = vunpack.c.h.b16 %v529
        %v617 = vunpack.c.l.b16 %v530
        %v618 = vunpack.c.h.b16 %v530
        %v619 = vunpack.c.l.b16 %v531
        %v620 = vunpack.c.h.b16 %v531
        %v621 = vunpack.c.l.b16 %v532
        %v622 = vunpack.c.h.b16 %v532
        %v623 = vunpack.c.l.b16 %v533
        %v624 = vunpack.c.h.b16 %v533
        %v625 = vunpack.c.l.b16 %v534
        %v626 = vunpack.c.h.b16 %v534
        %v627 = vunpack.c.l.b16 %v535
        %v628 = vunpack.c.h.b16 %v535
        %v629 = vunpack.c.l.b16 %v536
        %v630 = vunpack.c.h.b16 %v536
        %v631 = vunpack.c.l.b16 %v537
        %v632 = vunpack.c.h.b16 %v537
        %v633 = vunpack.c.l.b16 %v538
        %v634 = vunpack.c.h.b16 %v538
        %v635 = vpack.c.b16 %v573, %v571
        %v636 = vpack.c.b16 %v574, %v572
        %v637 = vpack.c.b16 %v577, %v575
        %v638 = vpack.c.b16 %v578, %v576
        %v639 = vpack.c.b16 %v581, %v579
        %v640 = vpack.c.b16 %v582, %v580
        %v641 = vpack.c.b16 %v585, %v583
        %v642 = vpack.c.b16 %v586, %v584
        %v643 = vpack.c.b16 %v589, %v587
        %v644 = vpack.c.b16 %v590, %v588
        %v645 = vpack.c.b16 %v593, %v591
        %v646 = vpack.c.b16 %v594, %v592
        %v647 = vpack.c.b16 %v597, %v595
        %v648 = vpack.c.b16 %v598, %v596
        %v649 = vpack.c.b16 %v601, %v599
        %v650 = vpack.c.b16 %v602, %v600
        %v651 = vpack.c.b16 %v605, %v603
        %v652 = vpack.c.b16 %v606, %v604
        %v653 = vpack.c.b16 %v609, %v607
        %v654 = vpack.c.b16 %v610, %v608
        %v655 = vpack.c.b16 %v613, %v611
        %v656 = vpack.c.b16 %v614, %v612
        %v657 = vpack.c.b16 %v617, %v615
        %v658 = vpack.c.b16 %v618, %v616
        %v659 = vpack.c.b16 %v621, %v619
        %v660 = vpack.c.b16 %v622, %v620
        %v661 = vpack.c.b16 %v625, %v623
        %v662 = vpack.c.b16 %v626, %v624
        %v663 = vpack.c.b16 %v629, %v627
        %v664 = vpack.c.b16 %v630, %v628
        %v665 = vpack.c.b16 %v633, %v631
        %v666 = vpack.c.b16 %v634, %v632
        %699 = vmatprep.subr.bf16.mxu0 %v636
        %700 = vmatpush1.bf16.msra.mxu0 %v635
        %701 = vmatprep.subr.bf16.mxu0 %v638
        %702 = vmatpush1.bf16.msra.mxu0 %v637
        %703 = vmatprep.subr.bf16.mxu0 %v640
        %704 = vmatpush1.bf16.msra.mxu0 %v639
        %705 = vmatprep.subr.bf16.mxu0 %v642
        %706 = vmatpush1.bf16.msra.mxu0 %v641
        %707 = vmatprep.subr.bf16.mxu0 %v644
        %708 = vmatpush1.bf16.msra.mxu0 %v643
        %709 = vmatprep.subr.bf16.mxu0 %v646
        %710 = vmatpush1.bf16.msra.mxu0 %v645
        %711 = vmatprep.subr.bf16.mxu0 %v648
        %712 = vmatpush1.bf16.msra.mxu0 %v647
        %713 = vmatprep.subr.bf16.mxu0 %v650
        %714 = vmatpush1.bf16.msra.mxu0 %v649
        %715 = vmatprep.subr.bf16.mxu0 %v652
        %716 = vmatpush1.bf16.msra.mxu0 %v651
        %717 = vmatprep.subr.bf16.mxu0 %v654
        %718 = vmatpush1.bf16.msra.mxu0 %v653
        %719 = vmatprep.subr.bf16.mxu0 %v656
        %720 = vmatpush1.bf16.msra.mxu0 %v655
        %721 = vmatprep.subr.bf16.mxu0 %v658
        %722 = vmatpush1.bf16.msra.mxu0 %v657
        %723 = vmatprep.subr.bf16.mxu0 %v660
        %724 = vmatpush1.bf16.msra.mxu0 %v659
        %725 = vmatprep.subr.bf16.mxu0 %v662
        %726 = vmatpush1.bf16.msra.mxu0 %v661
        %727 = vmatprep.subr.bf16.mxu0 %v664
        %728 = vmatpush1.bf16.msra.mxu0 %v663
        %729 = vmatprep.subr.bf16.mxu0 %v666
        %730 = vmatpush1.bf16.msra.mxu0 %v665
        %731 = vmatprep.mubr.bf16.mxu0 %v504
        %732 = vmatmul.mubr.bf16.gmra.mrb[0].mxu0 %v503
        %v733 = vpop.f32.mrb[0].mxu0
        %v734 = vadd.f32 0.0, %v733
        %v735 = vpop.f32.mrb[0].mxu0
        %v736 = vadd.f32 0.0, %v735
        %v737 = vpop.f32.mrb[0].mxu0
        %v738 = vadd.f32 0.0, %v737
        %v739 = vpop.f32.mrb[0].mxu0
        %v740 = vadd.f32 0.0, %v739
        %741 = vmatprep.mubr.bf16.mxu0 %v506
        %742 = vmatmul.mubr.bf16.gmra.mrb[0].mxu0 %v505
        %v743 = vpop.f32.mrb[0].mxu0
        %v744 = vadd.f32 0.0, %v743
        %v745 = vpop.f32.mrb[0].mxu0
        %v746 = vadd.f32 0.0, %v745
        %v747 = vpop.f32.mrb[0].mxu0
        %v748 = vadd.f32 0.0, %v747
        %v749 = vpop.f32.mrb[0].mxu0
        %v750 = vadd.f32 0.0, %v749
        %751 = vdwg.mxu0
        %v752 = vpack.c.bf16 %v738, %v734
        %v753 = vpack.c.bf16 %v740, %v736
        %v754 = vpack.c.bf16 %v748, %v744
        %v755 = vpack.c.bf16 %v750, %v746
        %v756 = vld [vmem:[%s4] sm:$0x3]
        %v759 = vunpack.c.l.s4 1966171168
        %v760 = vunpack.c.0.s8 %v759
        %v761 = vlaneseq
        %v762 = vshrl.u32 %v761, 7
        %v763 = vsub.s32 %v760, %v762
        %v764 = vrot.slane %v756, %v763
        %v765 = vcombine.high %v764, %v764
        %v767 = vunpack.c.l.s4 1966171168
        %v768 = vunpack.c.0.s8 %v767
        %v769 = vlaneseq
        %v770 = vshrl.u32 %v769, 7
        %v771 = vsub.s32 %v768, %v770
        %v772 = vrot.slane %v764, %v771
        %v774 = vunpack.c.l.s4 1966171168
        %v775 = vunpack.c.0.s8 %v774
        %v776 = vlaneseq
        %v777 = vshrl.u32 %v776, 7
        %v778 = vsub.s32 %v775, %v777
        %v779 = vrot.slane %v765, %v778
        %v781 = vpack.i.b16 %v772, %v772
        %v783 = vlaneseq
        %v784 = vshrl.u32 %v783, 7
        %v785 = vsub.s32 0, %v784
        %v786 = vrot.slane %v781, %v785
        %v788 = vpack.i.b16 %v779, %v779
        %v790 = vlaneseq
        %v791 = vshrl.u32 %v790, 7
        %v792 = vsub.s32 0, %v791
        %v793 = vrot.slane %v788, %v792
        %v794 = vadd.bf16 %v752, %v786
        %v795 = vadd.bf16 %v753, %v793
        %v796 = vadd.bf16 %v754, %v786
        %v797 = vadd.bf16 %v755, %v793
        %v798 = vmax.bf16 %v794, 0
        %v799 = vmax.bf16 %v795, 0
        %v800 = vmax.bf16 %v796, 0
        %v801 = vmax.bf16 %v797, 0
        %v802 = vld [vmem:[#allocation5] sm:$0xff]
        %v803 = vld [vmem:[#allocation5 + $0x8] sm:$0xff]
        %v804 = vld [vmem:[#allocation5 + $0x10] sm:$0xff]
        %v805 = vld [vmem:[#allocation5 + $0x18] sm:$0xff]
        %v806 = vld [vmem:[#allocation5 + $0x20] sm:$0xff]
        %v807 = vld [vmem:[#allocation5 + $0x28] sm:$0xff]
        %v808 = vld [vmem:[#allocation5 + $0x30] sm:$0xff]
        %v809 = vld [vmem:[#allocation5 + $0x38] sm:$0xff]
        %v810 = vld [vmem:[#allocation5 + $0x40] sm:$0xff]
        %v811 = vld [vmem:[#allocation5 + $0x48] sm:$0xff]
        %v812 = vld [vmem:[#allocation5 + $0x50] sm:$0xff]
        %v813 = vld [vmem:[#allocation5 + $0x58] sm:$0xff]
        %v814 = vld [vmem:[#allocation5 + $0x60] sm:$0xff]
        %v815 = vld [vmem:[#allocation5 + $0x68] sm:$0xff]
        %v816 = vld [vmem:[#allocation5 + $0x70] sm:$0xff]
        %v817 = vld [vmem:[#allocation5 + $0x78] sm:$0xff]
        %v818 = vld [vmem:[#allocation5 + $0x80] sm:$0xff]
        %v819 = vld [vmem:[#allocation5 + $0x88] sm:$0xff]
        %v820 = vld [vmem:[#allocation5 + $0x90] sm:$0xff]
        %v821 = vld [vmem:[#allocation5 + $0x98] sm:$0xff]
        %v822 = vld [vmem:[#allocation5 + $0xa0] sm:$0xff]
        %v823 = vld [vmem:[#allocation5 + $0xa8] sm:$0xff]
        %v824 = vld [vmem:[#allocation5 + $0xb0] sm:$0xff]
        %v825 = vld [vmem:[#allocation5 + $0xb8] sm:$0xff]
        %v826 = vld [vmem:[#allocation5 + $0xc0] sm:$0xff]
        %v827 = vld [vmem:[#allocation5 + $0xc8] sm:$0xff]
        %v828 = vld [vmem:[#allocation5 + $0xd0] sm:$0xff]
        %v829 = vld [vmem:[#allocation5 + $0xd8] sm:$0xff]
        %v830 = vld [vmem:[#allocation5 + $0xe0] sm:$0xff]
        %v831 = vld [vmem:[#allocation5 + $0xe8] sm:$0xff]
        %v832 = vld [vmem:[#allocation5 + $0xf0] sm:$0xff]
        %v833 = vld [vmem:[#allocation5 + $0xf8] sm:$0xff]
        %v866 = vunpack.c.l.b16 %v802
        %v867 = vunpack.c.h.b16 %v802
        %v868 = vunpack.c.l.b16 %v803
        %v869 = vunpack.c.h.b16 %v803
        %v870 = vunpack.c.l.b16 %v804
        %v871 = vunpack.c.h.b16 %v804
        %v872 = vunpack.c.l.b16 %v805
        %v873 = vunpack.c.h.b16 %v805
        %v874 = vunpack.c.l.b16 %v806
        %v875 = vunpack.c.h.b16 %v806
        %v876 = vunpack.c.l.b16 %v807
        %v877 = vunpack.c.h.b16 %v807
        %v878 = vunpack.c.l.b16 %v808
        %v879 = vunpack.c.h.b16 %v808
        %v880 = vunpack.c.l.b16 %v809
        %v881 = vunpack.c.h.b16 %v809
        %v882 = vunpack.c.l.b16 %v810
        %v883 = vunpack.c.h.b16 %v810
        %v884 = vunpack.c.l.b16 %v811
        %v885 = vunpack.c.h.b16 %v811
        %v886 = vunpack.c.l.b16 %v812
        %v887 = vunpack.c.h.b16 %v812
        %v888 = vunpack.c.l.b16 %v813
        %v889 = vunpack.c.h.b16 %v813
        %v890 = vunpack.c.l.b16 %v814
        %v891 = vunpack.c.h.b16 %v814
        %v892 = vunpack.c.l.b16 %v815
        %v893 = vunpack.c.h.b16 %v815
        %v894 = vunpack.c.l.b16 %v816
        %v895 = vunpack.c.h.b16 %v816
        %v896 = vunpack.c.l.b16 %v817
        %v897 = vunpack.c.h.b16 %v817
        %v898 = vunpack.c.l.b16 %v818
        %v899 = vunpack.c.h.b16 %v818
        %v900 = vunpack.c.l.b16 %v819
        %v901 = vunpack.c.h.b16 %v819
        %v902 = vunpack.c.l.b16 %v820
        %v903 = vunpack.c.h.b16 %v820
        %v904 = vunpack.c.l.b16 %v821
        %v905 = vunpack.c.h.b16 %v821
        %v906 = vunpack.c.l.b16 %v822
        %v907 = vunpack.c.h.b16 %v822
        %v908 = vunpack.c.l.b16 %v823
        %v909 = vunpack.c.h.b16 %v823
        %v910 = vunpack.c.l.b16 %v824
        %v911 = vunpack.c.h.b16 %v824
        %v912 = vunpack.c.l.b16 %v825
        %v913 = vunpack.c.h.b16 %v825
        %v914 = vunpack.c.l.b16 %v826
        %v915 = vunpack.c.h.b16 %v826
        %v916 = vunpack.c.l.b16 %v827
        %v917 = vunpack.c.h.b16 %v827
        %v918 = vunpack.c.l.b16 %v828
        %v919 = vunpack.c.h.b16 %v828
        %v920 = vunpack.c.l.b16 %v829
        %v921 = vunpack.c.h.b16 %v829
        %v922 = vunpack.c.l.b16 %v830
        %v923 = vunpack.c.h.b16 %v830
        %v924 = vunpack.c.l.b16 %v831
        %v925 = vunpack.c.h.b16 %v831
        %v926 = vunpack.c.l.b16 %v832
        %v927 = vunpack.c.h.b16 %v832
        %v928 = vunpack.c.l.b16 %v833
        %v929 = vunpack.c.h.b16 %v833
        %v930 = vpack.c.b16 %v868, %v866
        %v931 = vpack.c.b16 %v869, %v867
        %v932 = vpack.c.b16 %v872, %v870
        %v933 = vpack.c.b16 %v873, %v871
        %v934 = vpack.c.b16 %v876, %v874
        %v935 = vpack.c.b16 %v877, %v875
        %v936 = vpack.c.b16 %v880, %v878
        %v937 = vpack.c.b16 %v881, %v879
        %v938 = vpack.c.b16 %v884, %v882
        %v939 = vpack.c.b16 %v885, %v883
        %v940 = vpack.c.b16 %v888, %v886
        %v941 = vpack.c.b16 %v889, %v887
        %v942 = vpack.c.b16 %v892, %v890
        %v943 = vpack.c.b16 %v893, %v891
        %v944 = vpack.c.b16 %v896, %v894
        %v945 = vpack.c.b16 %v897, %v895
        %v946 = vpack.c.b16 %v900, %v898
        %v947 = vpack.c.b16 %v901, %v899
        %v948 = vpack.c.b16 %v904, %v902
        %v949 = vpack.c.b16 %v905, %v903
        %v950 = vpack.c.b16 %v908, %v906
        %v951 = vpack.c.b16 %v909, %v907
        %v952 = vpack.c.b16 %v912, %v910
        %v953 = vpack.c.b16 %v913, %v911
        %v954 = vpack.c.b16 %v916, %v914
        %v955 = vpack.c.b16 %v917, %v915
        %v956 = vpack.c.b16 %v920, %v918
        %v957 = vpack.c.b16 %v921, %v919
        %v958 = vpack.c.b16 %v924, %v922
        %v959 = vpack.c.b16 %v925, %v923
        %v960 = vpack.c.b16 %v928, %v926
        %v961 = vpack.c.b16 %v929, %v927
        %994 = vmatprep.subr.bf16.mxu0 %v931
        %995 = vmatpush1.bf16.msra.mxu0 %v930
        %996 = vmatprep.subr.bf16.mxu0 %v933
        %997 = vmatpush1.bf16.msra.mxu0 %v932
        %998 = vmatprep.subr.bf16.mxu0 %v935
        %999 = vmatpush1.bf16.msra.mxu0 %v934
        %1000 = vmatprep.subr.bf16.mxu0 %v937
        %1001 = vmatpush1.bf16.msra.mxu0 %v936
        %1002 = vmatprep.subr.bf16.mxu0 %v939
        %1003 = vmatpush1.bf16.msra.mxu0 %v938
        %1004 = vmatprep.subr.bf16.mxu0 %v941
        %1005 = vmatpush1.bf16.msra.mxu0 %v940
        %1006 = vmatprep.subr.bf16.mxu0 %v943
        %1007 = vmatpush1.bf16.msra.mxu0 %v942
        %1008 = vmatprep.subr.bf16.mxu0 %v945
        %1009 = vmatpush1.bf16.msra.mxu0 %v944
        %1010 = vmatprep.subr.bf16.mxu0 %v947
        %1011 = vmatpush1.bf16.msra.mxu0 %v946
        %1012 = vmatprep.subr.bf16.mxu0 %v949
        %1013 = vmatpush1.bf16.msra.mxu0 %v948
        %1014 = vmatprep.subr.bf16.mxu0 %v951
        %1015 = vmatpush1.bf16.msra.mxu0 %v950
        %1016 = vmatprep.subr.bf16.mxu0 %v953
        %1017 = vmatpush1.bf16.msra.mxu0 %v952
        %1018 = vmatprep.subr.bf16.mxu0 %v955
        %1019 = vmatpush1.bf16.msra.mxu0 %v954
        %1020 = vmatprep.subr.bf16.mxu0 %v957
        %1021 = vmatpush1.bf16.msra.mxu0 %v956
        %1022 = vmatprep.subr.bf16.mxu0 %v959
        %1023 = vmatpush1.bf16.msra.mxu0 %v958
        %1024 = vmatprep.subr.bf16.mxu0 %v961
        %1025 = vmatpush1.bf16.msra.mxu0 %v960
        %1026 = vmatprep.mubr.bf16.mxu0 %v799
        %1027 = vmatmul.mubr.bf16.gmra.mrb[0].mxu0 %v798
        %v1028 = vpop.f32.mrb[0].mxu0
        %v1029 = vadd.f32 0.0, %v1028
        %v1030 = vpop.f32.mrb[0].mxu0
        %v1031 = vadd.f32 0.0, %v1030
        %v1032 = vpop.f32.mrb[0].mxu0
        %v1033 = vadd.f32 0.0, %v1032
        %v1034 = vpop.f32.mrb[0].mxu0
        %v1035 = vadd.f32 0.0, %v1034
        %1036 = vmatprep.mubr.bf16.mxu0 %v801
        %1037 = vmatmul.mubr.bf16.gmra.mrb[0].mxu0 %v800
        %v1038 = vpop.f32.mrb[0].mxu0
        %v1039 = vadd.f32 0.0, %v1038
        %v1040 = vpop.f32.mrb[0].mxu0
        %v1041 = vadd.f32 0.0, %v1040
        %v1042 = vpop.f32.mrb[0].mxu0
        %v1043 = vadd.f32 0.0, %v1042
        %v1044 = vpop.f32.mrb[0].mxu0
        %v1045 = vadd.f32 0.0, %v1044
        %1046 = vdwg.mxu0
        %v1047 = vpack.c.bf16 %v1033, %v1029
        %v1048 = vpack.c.bf16 %v1035, %v1031
        %v1049 = vpack.c.bf16 %v1043, %v1039
        %v1050 = vpack.c.bf16 %v1045, %v1041
        %v1051 = vld [vmem:[%s6] sm:$0x3]
        %v1054 = vunpack.c.l.s4 1966171168
        %v1055 = vunpack.c.0.s8 %v1054
        %v1056 = vlaneseq
        %v1057 = vshrl.u32 %v1056, 7
        %v1058 = vsub.s32 %v1055, %v1057
        %v1059 = vrot.slane %v1051, %v1058
        %v1060 = vcombine.high %v1059, %v1059
        %v1062 = vunpack.c.l.s4 1966171168
        %v1063 = vunpack.c.0.s8 %v1062
        %v1064 = vlaneseq
        %v1065 = vshrl.u32 %v1064, 7
        %v1066 = vsub.s32 %v1063, %v1065
        %v1067 = vrot.slane %v1059, %v1066
        %v1069 = vunpack.c.l.s4 1966171168
        %v1070 = vunpack.c.0.s8 %v1069
        %v1071 = vlaneseq
        %v1072 = vshrl.u32 %v1071, 7
        %v1073 = vsub.s32 %v1070, %v1072
        %v1074 = vrot.slane %v1060, %v1073
        %v1076 = vpack.i.b16 %v1067, %v1067
        %v1078 = vlaneseq
        %v1079 = vshrl.u32 %v1078, 7
        %v1080 = vsub.s32 0, %v1079
        %v1081 = vrot.slane %v1076, %v1080
        %v1083 = vpack.i.b16 %v1074, %v1074
        %v1085 = vlaneseq
        %v1086 = vshrl.u32 %v1085, 7
        %v1087 = vsub.s32 0, %v1086
        %v1088 = vrot.slane %v1083, %v1087
        %v1089 = vadd.bf16 %v1047, %v1081
        %v1090 = vadd.bf16 %v1048, %v1088
        %v1091 = vadd.bf16 %v1049, %v1081
        %v1092 = vadd.bf16 %v1050, %v1088
        %v1093 = vmax.bf16 %v1089, 0
        %v1094 = vmax.bf16 %v1090, 0
        %v1095 = vmax.bf16 %v1091, 0
        %v1096 = vmax.bf16 %v1092, 0
        %v1097 = vld [vmem:[#allocation7] sm:$0xf]
        %v1098 = vld [vmem:[#allocation7 + $0x4] sm:$0xf]
        %v1099 = vld [vmem:[#allocation7 + $0x8] sm:$0xf]
        %v1100 = vld [vmem:[#allocation7 + $0xc] sm:$0xf]
        %v1101 = vld [vmem:[#allocation7 + $0x10] sm:$0xf]
        %v1102 = vld [vmem:[#allocation7 + $0x14] sm:$0xf]
        %v1103 = vld [vmem:[#allocation7 + $0x18] sm:$0xf]
        %v1104 = vld [vmem:[#allocation7 + $0x1c] sm:$0xf]
        %v1105 = vld [vmem:[#allocation7 + $0x20] sm:$0xf]
        %v1106 = vld [vmem:[#allocation7 + $0x24] sm:$0xf]
        %v1107 = vld [vmem:[#allocation7 + $0x28] sm:$0xf]
        %v1108 = vld [vmem:[#allocation7 + $0x2c] sm:$0xf]
        %v1109 = vld [vmem:[#allocation7 + $0x30] sm:$0xf]
        %v1110 = vld [vmem:[#allocation7 + $0x34] sm:$0xf]
        %v1111 = vld [vmem:[#allocation7 + $0x38] sm:$0xf]
        %v1112 = vld [vmem:[#allocation7 + $0x3c] sm:$0xf]
        %v1113 = vld [vmem:[#allocation7 + $0x40] sm:$0xf]
        %v1114 = vld [vmem:[#allocation7 + $0x44] sm:$0xf]
        %v1115 = vld [vmem:[#allocation7 + $0x48] sm:$0xf]
        %v1116 = vld [vmem:[#allocation7 + $0x4c] sm:$0xf]
        %v1117 = vld [vmem:[#allocation7 + $0x50] sm:$0xf]
        %v1118 = vld [vmem:[#allocation7 + $0x54] sm:$0xf]
        %v1119 = vld [vmem:[#allocation7 + $0x58] sm:$0xf]
        %v1120 = vld [vmem:[#allocation7 + $0x5c] sm:$0xf]
        %v1121 = vld [vmem:[#allocation7 + $0x60] sm:$0xf]
        %v1122 = vld [vmem:[#allocation7 + $0x64] sm:$0xf]
        %v1123 = vld [vmem:[#allocation7 + $0x68] sm:$0xf]
        %v1124 = vld [vmem:[#allocation7 + $0x6c] sm:$0xf]
        %v1125 = vld [vmem:[#allocation7 + $0x70] sm:$0xf]
        %v1126 = vld [vmem:[#allocation7 + $0x74] sm:$0xf]
        %v1127 = vld [vmem:[#allocation7 + $0x78] sm:$0xf]
        %v1128 = vld [vmem:[#allocation7 + $0x7c] sm:$0xf]
        %v1129 = vld [vmem:[%s8] sm:$0x1]
        %v1131 = vlaneseq
        %v1132 = vshrl.u32 %v1131, 7
        %v1133 = vsub.s32 0, %v1132
        %v1134 = vrot.slane %v1129, %v1133
        %v1168 = vunpack.c.l.b16 %v1097
        %v1169 = vunpack.c.l.b16 %v1098
        %v1170 = vunpack.c.l.b16 %v1099
        %v1171 = vunpack.c.l.b16 %v1100
        %v1172 = vunpack.c.l.b16 %v1101
        %v1173 = vunpack.c.l.b16 %v1102
        %v1174 = vunpack.c.l.b16 %v1103
        %v1175 = vunpack.c.l.b16 %v1104
        %v1176 = vunpack.c.l.b16 %v1105
        %v1177 = vunpack.c.l.b16 %v1106
        %v1178 = vunpack.c.l.b16 %v1107
        %v1179 = vunpack.c.l.b16 %v1108
        %v1180 = vunpack.c.l.b16 %v1109
        %v1181 = vunpack.c.l.b16 %v1110
        %v1182 = vunpack.c.l.b16 %v1111
        %v1183 = vunpack.c.l.b16 %v1112
        %v1184 = vunpack.c.l.b16 %v1113
        %v1185 = vunpack.c.l.b16 %v1114
        %v1186 = vunpack.c.l.b16 %v1115
        %v1187 = vunpack.c.l.b16 %v1116
        %v1188 = vunpack.c.l.b16 %v1117
        %v1189 = vunpack.c.l.b16 %v1118
        %v1190 = vunpack.c.l.b16 %v1119
        %v1191 = vunpack.c.l.b16 %v1120
        %v1192 = vunpack.c.l.b16 %v1121
        %v1193 = vunpack.c.l.b16 %v1122
        %v1194 = vunpack.c.l.b16 %v1123
        %v1195 = vunpack.c.l.b16 %v1124
        %v1196 = vunpack.c.l.b16 %v1125
        %v1197 = vunpack.c.l.b16 %v1126
        %v1198 = vunpack.c.l.b16 %v1127
        %v1199 = vunpack.c.l.b16 %v1128
        %v1200 = vpack.c.b16 %v1169, %v1168
        %v1201 = vpack.c.b16 %v1171, %v1170
        %v1202 = vpack.c.b16 %v1173, %v1172
        %v1203 = vpack.c.b16 %v1175, %v1174
        %v1204 = vpack.c.b16 %v1177, %v1176
        %v1205 = vpack.c.b16 %v1179, %v1178
        %v1206 = vpack.c.b16 %v1181, %v1180
        %v1207 = vpack.c.b16 %v1183, %v1182
        %v1208 = vpack.c.b16 %v1185, %v1184
        %v1209 = vpack.c.b16 %v1187, %v1186
        %v1210 = vpack.c.b16 %v1189, %v1188
        %v1211 = vpack.c.b16 %v1191, %v1190
        %v1212 = vpack.c.b16 %v1193, %v1192
        %v1213 = vpack.c.b16 %v1195, %v1194
        %v1214 = vpack.c.b16 %v1197, %v1196
        %v1215 = vpack.c.b16 %v1199, %v1198
        %1232 = vmatprep.subr.bf16.mxu0 0
        %1233 = vmatpush1.bf16.msra.mxu0 %v1200
        %1234 = vmatprep.subr.bf16.mxu0 0
        %1235 = vmatpush1.bf16.msra.mxu0 %v1201
        %1236 = vmatprep.subr.bf16.mxu0 0
        %1237 = vmatpush1.bf16.msra.mxu0 %v1202
        %1238 = vmatprep.subr.bf16.mxu0 0
        %1239 = vmatpush1.bf16.msra.mxu0 %v1203
        %1240 = vmatprep.subr.bf16.mxu0 0
        %1241 = vmatpush1.bf16.msra.mxu0 %v1204
        %1242 = vmatprep.subr.bf16.mxu0 0
        %1243 = vmatpush1.bf16.msra.mxu0 %v1205
        %1244 = vmatprep.subr.bf16.mxu0 0
        %1245 = vmatpush1.bf16.msra.mxu0 %v1206
        %1246 = vmatprep.subr.bf16.mxu0 0
        %1247 = vmatpush1.bf16.msra.mxu0 %v1207
        %1248 = vmatprep.subr.bf16.mxu0 0
        %1249 = vmatpush1.bf16.msra.mxu0 %v1208
        %1250 = vmatprep.subr.bf16.mxu0 0
        %1251 = vmatpush1.bf16.msra.mxu0 %v1209
        %1252 = vmatprep.subr.bf16.mxu0 0
        %1253 = vmatpush1.bf16.msra.mxu0 %v1210
        %1254 = vmatprep.subr.bf16.mxu0 0
        %1255 = vmatpush1.bf16.msra.mxu0 %v1211
        %1256 = vmatprep.subr.bf16.mxu0 0
        %1257 = vmatpush1.bf16.msra.mxu0 %v1212
        %1258 = vmatprep.subr.bf16.mxu0 0
        %1259 = vmatpush1.bf16.msra.mxu0 %v1213
        %1260 = vmatprep.subr.bf16.mxu0 0
        %1261 = vmatpush1.bf16.msra.mxu0 %v1214
        %1262 = vmatprep.subr.bf16.mxu0 0
        %1263 = vmatpush1.bf16.msra.mxu0 %v1215
        %1264 = vmatprep.mubr.bf16.mxu0 %v1094
        %1265 = vmatmul.mubr.bf16.gmra.mrb[0].mxu0 %v1093
        %v1266 = vpop.f32.mrb[0].mxu0
        %v1267 = vadd.f32 %v1134, %v1266
        %v1268 = vpop.f32.mrb[0].mxu0
        %v1269 = vpop.f32.mrb[0].mxu0
        %v1270 = vadd.f32 %v1134, %v1269
        %v1271 = vpop.f32.mrb[0].mxu0
        %1272 = vmatprep.mubr.bf16.mxu0 %v1096
        %1273 = vmatmul.mubr.bf16.gmra.mrb[0].mxu0 %v1095
        %v1274 = vpop.f32.mrb[0].mxu0
        %v1275 = vadd.f32 %v1134, %v1274
        %v1276 = vpop.f32.mrb[0].mxu0
        %v1277 = vpop.f32.mrb[0].mxu0
        %v1278 = vadd.f32 %v1134, %v1277
        %v1279 = vpop.f32.mrb[0].mxu0
        %1280 = vdwg.mxu0
        %v1281 = vmul.f32 %v1267, 0.5
        %v1282 = vmul.f32 %v1270, 0.5
        %v1283 = vmul.f32 %v1275, 0.5
        %v1284 = vmul.f32 %v1278, 0.5
        %v1285 = vtanh.pop %v1281
        %v1286 = vtanh.pop %v1282
        %v1287 = vtanh.pop %v1283
        %v1288 = vtanh.pop %v1284
        %v1289 = vadd.f32 %v1285, 1.0
        %v1290 = vadd.f32 %v1286, 1.0
        %v1291 = vadd.f32 %v1287, 1.0
        %v1292 = vadd.f32 %v1288, 1.0
        %v1293 = vmul.f32 %v1289, 0.5
        %v1294 = vmul.f32 %v1290, 0.5
        %v1295 = vmul.f32 %v1291, 0.5
        %v1296 = vmul.f32 %v1292, 0.5
        %v1297 = vpack.c.bf16 %v1294, %v1293
        %v1298 = vpack.c.bf16 %v1296, %v1295
        %v1301 = vunpack.c.l.b16 %v1297
        %v1302 = vunpack.c.h.b16 %v1297
        %v1303 = vunpack.c.l.b16 %v1298
        %v1304 = vunpack.c.h.b16 %v1298
        %v1305 = vpack.c.b16 %v1301, %v1301
        %v1306 = vpack.c.b16 %v1302, %v1302
        %v1307 = vpack.c.b16 %v1303, %v1303
        %v1308 = vpack.c.b16 %v1304, %v1304
        %1313 = vst [vmem:[%s370] sm:$0xf] %v1305
        %1314 = vst [vmem:[%s370 + $0x4] sm:$0xf] %v1306
        %1315 = vst [vmem:[%s370 + $0x8] sm:$0xf] %v1307
        %1316 = vst [vmem:[%s370 + $0xc] sm:$0xf] %v1308
        %s1317 = sand.u32 %s227, 1
        %s1318 = scalar_lea.sflag [#allocation4], %s1317
        %s1319 = sand.u32 %s227, 1
        %s1320 = smul.addr %s1319, 16
        %s1321 = scalar_lea.vmem [#allocation8], %s1320
        // Predicated region
        $region69: #{tpu_custom_call.1} parent=55 // pred_check
          %p1322 = pneg %p237
        $region70: #{tpu_custom_call.1} parent=55 // pred_check_branch
          %1324 = sbr.rel (%p1322) target = $region72
        $region71: #{tpu_custom_call.1} parent=55 // pred_region
          %s1325 = smul.u32 4, %s25
          %s1327 = ssub.s32 256, 256
          %1328 = vsyncadd %s1318, %s1327
          %s1329 = smul.addr %s1325, 64
          %s1330 = scalar_lea.hbm %s9, %s1329
          %s1331 = sshll.u32 %s1321, 4
          %s1332 = int_to_ptr.vmem [resolvable:$true] %s1331
          %1337 = dma.vmem_to_hbm [thread:$0]  %s1332, 256, %s1330, %s1318, 64, 64, 4
        $region72: #{tpu_custom_call.1} parent=55 // pred_fallthru
          _
      $region56: #{tpu_custom_call.1} parent=5 // pred_fallthru
        _
      %p1338 = scmp.le.s32.totalorder 2, %s20
      // Predicated region
      $region73: #{tpu_custom_call.1} parent=5 // pred_check
        %p1339 = pneg %p1338
      $region74: #{tpu_custom_call.1} parent=5 // pred_check_branch
        %1341 = sbr.rel (%p1339) target = $region76
      $region75: #{tpu_custom_call.1} parent=5 // pred_region
        %s1342 = ssub.s32 %s20, 2
        // Predicated region
        $region77: #{tpu_custom_call.1} parent=75 // pred_check
          %p1343 = pneg %p243
        $region78: #{tpu_custom_call.1} parent=75 // pred_check_branch
          %1345 = sbr.rel (%p1343) target = $region80
        $region79: #{tpu_custom_call.1} parent=75 // pred_region
          %s1346 = sand.u32 %s228, 1
          %s1347 = scalar_lea.sflag [#allocation4], %s1346
          %s1348 = sand.u32 %s228, 1
          %s1349 = smul.addr %s1348, 16
          %s1350 = scalar_lea.vmem [#allocation8], %s1349
          %1351 = dma.done %s1347, 256
        $region80: #{tpu_custom_call.1} parent=75 // pred_fallthru
          _
      $region76: #{tpu_custom_call.1} parent=5 // pred_fallthru
        _
    $region6: #{tpu_custom_call.1} parent=1 // loop_footer
      %s24 = sadd.s32 1, %s20
    $region7: #{tpu_custom_call.1} parent=1 // loop_footer_branch
      %19 = sbr.rel target = $region3
    $region8: #{tpu_custom_call.1} parent=1 // loop_exit
      _
    %1352 = vsyncpa [#allocation3], 1
    %s1353 = scalar_lea.sflag [#allocation3], 1
    %1354 = vsyncpa %s1353, 1
    %1355 = vsyncpa [#allocation6], 1
    %1356 = vsyncpa [#allocation4], 1
    %s1357 = scalar_lea.sflag [#allocation4], 1
    %1358 = vsyncpa %s1357, 1

// kernel: tpu_custom_call.1
$region0: #{tpu_custom_call.1}
  #allocation0 [shape = 'u32[]', space=smem, size = 0x4, offset = 0x4, fixed_abs, tag = 'smem constant byte address 0x4 - core index']
  #allocation1 [shape = 'u32[144,128]{1,0:T(1,128)}', space=vmem, size = 0x12000, scoped, tag = 'internal scratch']
  %s0 = inlined_call_operand.vmem [shape: f32[64,16], index: 0, kind: input, shape index: {}]
  %s1 = inlined_call_operand.vmem [shape: bf16[16,256], index: 1, kind: input, shape index: {}]
  %s2 = inlined_call_operand.vmem [shape: bf16[1,256], index: 2, kind: input, shape index: {}]
  %s3 = inlined_call_operand.hbm [shape: bf16[256,256], index: 3, kind: input, shape index: {}]
  %s4 = inlined_call_operand.vmem [shape: bf16[1,256], index: 4, kind: input, shape index: {}]
  %s5 = inlined_call_operand.hbm [shape: bf16[256,256], index: 5, kind: input, shape index: {}]
  %s6 = inlined_call_operand.vmem [shape: bf16[1,256], index: 6, kind: input, shape index: {}]
  %s7 = inlined_call_operand.hbm [shape: bf16[256,128], index: 7, kind: input, shape index: {}]
  %s8 = inlined_call_operand.vmem [shape: f32[1,128], index: 8, kind: input, shape index: {}]
  %s9 = inlined_call_operand.hbm [shape: bf16[64,128], index: 9, kind: output, shape index: {}]
  %s10 = sld [smem:[#allocation0]]
  $region81: #{tpu_custom_call.1} parent=0
    _
  %s12 = ssub.s32 1, %s10
  %s13 = scalar_select 0, %s12, %s10
  $region1: #{tpu_custom_call.1} parent=0
    #allocation2 [shape = 'u8[131072]{0}', space=vmem, size = 0x20000, scoped, tag = 'input window, operand 3, single buffered']
    #allocation3 [shape = 's32[2]{0}', space=sflag, size = 0x8, scoped, tag = 'scoped memory for tpu_custom_call.1']
    #allocation4 [shape = 's32[2]{0}', space=sflag, size = 0x8, scoped, tag = 'scoped memory for tpu_custom_call.1']
    #allocation5 [shape = 'u8[131072]{0}', space=vmem, size = 0x20000, scoped, tag = 'input window, operand 5, single buffered']
    #allocation6 [shape = 's32[1]{0}', space=sflag, size = 0x4, scoped, tag = 'scoped memory for tpu_custom_call.1']
    #allocation7 [shape = 'u8[65536]{0}', space=vmem, size = 0x10000, scoped, tag = 'input window, operand 7, single buffered']
    #allocation8 [shape = 'u8[16384]{0}', space=vmem, size = 0x4000, scoped, tag = 'output window, operand 0']
    %14 = vsyncpa [#allocation3], 0
    %15 = vsyncpa [#allocation6], 0
    %16 = vsyncpa [#allocation4], 0
    %s17 = scalar_lea.sflag [#allocation4], 1
    %18 = vsyncpa %s17, 0
    loop: start=0, step=1, limit=4
    $region2: #{tpu_custom_call.1} parent=1 // loop_pre_header
      _
    $region3: #{tpu_custom_call.1} parent=1 // loop_header
      %s20 = sphi 0, %s24
      %p21 = scmp.ge.s32.totalorder %s20, 4
      %s30 = sphi 0, %s32
      %s33 = sphi 0, %s30
      %s34 = sphi 0, %s33
      %s50 = sphi 0, %s34
      %s54 = sphi 0, %s54
      %s56 = sphi 0, %s54
      %s57 = sphi 0, %s56
      %s71 = sphi 0, %s57
      %s75 = sphi 0, %s75
      %s77 = sphi 0, %s75
      %s78 = sphi 0, %s77
      %s92 = sphi 0, %s78
      %s96 = sphi 0, %s96
      %s98 = sphi 0, %s96
      %s99 = sphi 0, %s98
      %s113 = sphi 0, %s99
      %s117 = sphi 0, %s117
      %s119 = sphi 0, %s117
      %s120 = sphi 0, %s119
      %s134 = sphi 0, %s120
      %s138 = sphi 0, %s138
      %s140 = sphi 0, %s138
      %s141 = sphi 0, %s140
      %s155 = sphi 0, %s141
      %s159 = sphi 0, %s159
      %s161 = sphi 0, %s159
      %s162 = sphi 0, %s161
      %s176 = sphi 0, %s162
      %s180 = sphi 0, %s180
      %s182 = sphi 0, %s180
      %s183 = sphi 0, %s182
      %s197 = sphi 0, %s183
      %s201 = sphi 0, %s201
      %s203 = sphi 0, %s201
      %s204 = sphi 0, %s203
      %s218 = sphi 0, %s204
      %s224 = sphi 0, %s226
      %s227 = sphi 0, %s224
      %s228 = sphi 0, %s227
      %s244 = sphi 0, %s228
    $region4: #{tpu_custom_call.1} parent=1 // loop_header_branch
      %23 = sbr.rel (%p21) target = $region8
    $region5: #{tpu_custom_call.1} parent=1 // loop_body
      %s25 = ssub.s32 %s20, 1
      %s26 = ssub.s32 %s20, 2
      %s27 = sadd.s32 %s20, 1
      %s28 = ssub.s32 %s20, %s27
      %p29 = scmp.eq.s32.totalorder %s28, 0
      %s31 = sadd.s32 %s30, 1
      %s32 = scalar_select %p29, %s30, %s31
      %p35 = pneg %p29
      %p36 = scmp.eq.s32.totalorder %s20, 1
      %p37 = por %p35, %p36
      %p38 = scmp.ne.s32.totalorder %s30, %s33
      %p39 = scmp.eq.s32.totalorder %s20, 0
      %p40 = por %p38, %p39
      %p41 = scmp.ne.s32.totalorder %s30, %s33
      %p42 = scmp.eq.s32.totalorder %s25, 1
      %p43 = por %p41, %p42
      %p44 = scmp.ne.s32.totalorder %s33, %s34
      %p45 = scmp.eq.s32.totalorder %s25, 0
      %p46 = por %p44, %p45
      %p47 = scmp.ne.s32.totalorder %s33, %s34
      %p48 = scmp.eq.s32.totalorder %s26, 1
      %p49 = por %p47, %p48
      %p51 = scmp.ne.s32.totalorder %s34, %s50
      %p52 = scmp.eq.s32.totalorder %s26, 0
      %p53 = por %p51, %p52
      %s55 = sadd.s32 %s54, 1
      %p58 = scmp.eq.s32.totalorder %s20, 1
      %p59 = scmp.ne.s32.totalorder %s54, %s56
      %p60 = scmp.eq.s32.totalorder %s20, 0
      %p61 = por %p59, %p60
      %p62 = scmp.ne.s32.totalorder %s54, %s56
      %p63 = scmp.eq.s32.totalorder %s25, 1
      %p64 = por %p62, %p63
      %p65 = scmp.ne.s32.totalorder %s56, %s57
      %p66 = scmp.eq.s32.totalorder %s25, 0
      %p67 = por %p65, %p66
      %p68 = scmp.ne.s32.totalorder %s56, %s57
      %p69 = scmp.eq.s32.totalorder %s26, 1
      %p70 = por %p68, %p69
      %p72 = scmp.ne.s32.totalorder %s57, %s71
      %p73 = scmp.eq.s32.totalorder %s26, 0
      %p74 = por %p72, %p73
      %s76 = sadd.s32 %s75, 1
      %p79 = scmp.eq.s32.totalorder %s20, 1
      %p80 = scmp.ne.s32.totalorder %s75, %s77
      %p81 = scmp.eq.s32.totalorder %s20, 0
      %p82 = por %p80, %p81
      %p83 = scmp.ne.s32.totalorder %s75, %s77
      %p84 = scmp.eq.s32.totalorder %s25, 1
      %p85 = por %p83, %p84
      %p86 = scmp.ne.s32.totalorder %s77, %s78
      %p87 = scmp.eq.s32.totalorder %s25, 0
      %p88 = por %p86, %p87
      %p89 = scmp.ne.s32.totalorder %s77, %s78
      %p90 = scmp.eq.s32.totalorder %s26, 1
      %p91 = por %p89, %p90
      %p93 = scmp.ne.s32.totalorder %s78, %s92
      %p94 = scmp.eq.s32.totalorder %s26, 0
      %p95 = por %p93, %p94
      %s97 = sadd.s32 %s96, 1
      %p100 = scmp.eq.s32.totalorder %s20, 1
      %p101 = scmp.ne.s32.totalorder %s96, %s98
      %p102 = scmp.eq.s32.totalorder %s20, 0
      %p103 = por %p101, %p102
      %p104 = scmp.ne.s32.totalorder %s96, %s98
      %p105 = scmp.eq.s32.totalorder %s25, 1
      %p106 = por %p104, %p105
      %p107 = scmp.ne.s32.totalorder %s98, %s99
      %p108 = scmp.eq.s32.totalorder %s25, 0
      %p109 = por %p107, %p108
      %p110 = scmp.ne.s32.totalorder %s98, %s99
      %p111 = scmp.eq.s32.totalorder %s26, 1
      %p112 = por %p110, %p111
      %p114 = scmp.ne.s32.totalorder %s99, %s113
      %p115 = scmp.eq.s32.totalorder %s26, 0
      %p116 = por %p114, %p115
      %s118 = sadd.s32 %s117, 1
      %p121 = scmp.eq.s32.totalorder %s20, 1
      %p122 = scmp.ne.s32.totalorder %s117, %s119
      %p123 = scmp.eq.s32.totalorder %s20, 0
      %p124 = por %p122, %p123
      %p125 = scmp.ne.s32.totalorder %s117, %s119
      %p126 = scmp.eq.s32.totalorder %s25, 1
      %p127 = por %p125, %p126
      %p128 = scmp.ne.s32.totalorder %s119, %s120
      %p129 = scmp.eq.s32.totalorder %s25, 0
      %p130 = por %p128, %p129
      %p131 = scmp.ne.s32.totalorder %s119, %s120
      %p132 = scmp.eq.s32.totalorder %s26, 1
      %p133 = por %p131, %p132
      %p135 = scmp.ne.s32.totalorder %s120, %s134
      %p136 = scmp.eq.s32.totalorder %s26, 0
      %p137 = por %p135, %p136
      %s139 = sadd.s32 %s138, 1
      %p142 = scmp.eq.s32.totalorder %s20, 1
      %p143 = scmp.ne.s32.totalorder %s138, %s140
      %p144 = scmp.eq.s32.totalorder %s20, 0
      %p145 = por %p143, %p144
      %p146 = scmp.ne.s32.totalorder %s138, %s140
      %p147 = scmp.eq.s32.totalorder %s25, 1
      %p148 = por %p146, %p147
      %p149 = scmp.ne.s32.totalorder %s140, %s141
      %p150 = scmp.eq.s32.totalorder %s25, 0
      %p151 = por %p149, %p150
      %p152 = scmp.ne.s32.totalorder %s140, %s141
      %p153 = scmp.eq.s32.totalorder %s26, 1
      %p154 = por %p152, %p153
      %p156 = scmp.ne.s32.totalorder %s141, %s155
      %p157 = scmp.eq.s32.totalorder %s26, 0
      %p158 = por %p156, %p157
      %s160 = sadd.s32 %s159, 1
      %p163 = scmp.eq.s32.totalorder %s20, 1
      %p164 = scmp.ne.s32.totalorder %s159, %s161
      %p165 = scmp.eq.s32.totalorder %s20, 0
      %p166 = por %p164, %p165
      %p167 = scmp.ne.s32.totalorder %s159, %s161
      %p168 = scmp.eq.s32.totalorder %s25, 1
      %p169 = por %p167, %p168
      %p170 = scmp.ne.s32.totalorder %s161, %s162
      %p171 = scmp.eq.s32.totalorder %s25, 0
      %p172 = por %p170, %p171
      %p173 = scmp.ne.s32.totalorder %s161, %s162
      %p174 = scmp.eq.s32.totalorder %s26, 1
      %p175 = por %p173, %p174
      %p177 = scmp.ne.s32.totalorder %s162, %s176
      %p178 = scmp.eq.s32.totalorder %s26, 0
      %p179 = por %p177, %p178
      %s181 = sadd.s32 %s180, 1
      %p184 = scmp.eq.s32.totalorder %s20, 1
      %p185 = scmp.ne.s32.totalorder %s180, %s182
      %p186 = scmp.eq.s32.totalorder %s20, 0
      %p187 = por %p185, %p186
      %p188 = scmp.ne.s32.totalorder %s180, %s182
      %p189 = scmp.eq.s32.totalorder %s25, 1
      %p190 = por %p188, %p189
      %p191 = scmp.ne.s32.totalorder %s182, %s183
      %p192 = scmp.eq.s32.totalorder %s25, 0
      %p193 = por %p191, %p192
      %p194 = scmp.ne.s32.totalorder %s182, %s183
      %p195 = scmp.eq.s32.totalorder %s26, 1
      %p196 = por %p194, %p195
      %p198 = scmp.ne.s32.totalorder %s183, %s197
      %p199 = scmp.eq.s32.totalorder %s26, 0
      %p200 = por %p198, %p199
      %s202 = sadd.s32 %s201, 1
      %p205 = scmp.eq.s32.totalorder %s20, 1
      %p206 = scmp.ne.s32.totalorder %s201, %s203
      %p207 = scmp.eq.s32.totalorder %s20, 0
      %p208 = por %p206, %p207
      %p209 = scmp.ne.s32.totalorder %s201, %s203
      %p210 = scmp.eq.s32.totalorder %s25, 1
      %p211 = por %p209, %p210
      %p212 = scmp.ne.s32.totalorder %s203, %s204
      %p213 = scmp.eq.s32.totalorder %s25, 0
      %p214 = por %p212, %p213
      %p215 = scmp.ne.s32.totalorder %s203, %s204
      %p216 = scmp.eq.s32.totalorder %s26, 1
      %p217 = por %p215, %p216
      %p219 = scmp.ne.s32.totalorder %s204, %s218
      %p220 = scmp.eq.s32.totalorder %s26, 0
      %p221 = por %p219, %p220
      %s222 = ssub.s32 %s20, %s27
      %p223 = scmp.eq.s32.totalorder %s222, 0
      %s225 = sadd.s32 %s224, 1
      %s226 = scalar_select %p223, %s224, %s225
      %p229 = pneg %p223
      %p230 = scmp.eq.s32.totalorder %s20, 1
      %p231 = por %p229, %p230
      %p232 = scmp.ne.s32.totalorder %s224, %s227
      %p233 = scmp.eq.s32.totalorder %s20, 0
      %p234 = por %p232, %p233
      %p235 = scmp.ne.s32.totalorder %s224, %s227
      %p236 = scmp.eq.s32.totalorder %s25, 1
      %p237 = por %p235, %p236
      %p238 = scmp.ne.s32.totalorder %s227, %s228
      %p239 = scmp.eq.s32.totalorder %s25, 0
      %p240 = por %p238, %p239
      %p241 = scmp.ne.s32.totalorder %s227, %s228
      %p242 = scmp.eq.s32.totalorder %s26, 1
      %p243 = por %p241, %p242
      %p245 = scmp.ne.s32.totalorder %s228, %s244
      %p246 = scmp.eq.s32.totalorder %s26, 0
      %p247 = por %p245, %p246
      %p248 = scmp.le.s32.totalorder 1, %s20
      %p249 = scmp.lt.s32.totalorder %s20, 3
      %p250 = pnand %p248, %p249
      %p251 = pneg %p250
      // Predicated region
      $region9: #{tpu_custom_call.1} parent=5 // pred_check
        _
      $region10: #{tpu_custom_call.1} parent=5 // pred_check_branch
        %253 = sbr.rel (%p250) target = $region12
      $region11: #{tpu_custom_call.1} parent=5 // pred_region
        %s254 = ssub.s32 %s20, 1
        // Predicated region
        $region13: #{tpu_custom_call.1} parent=11 // pred_check
          %p255 = pneg %p67
        $region14: #{tpu_custom_call.1} parent=11 // pred_check_branch
          %257 = sbr.rel (%p255) target = $region16
        $region15: #{tpu_custom_call.1} parent=11 // pred_region
          _
        $region16: #{tpu_custom_call.1} parent=11 // pred_fallthru
          _
        // Predicated region
        $region17: #{tpu_custom_call.1} parent=11 // pred_check
          %p258 = pneg %p88
        $region18: #{tpu_custom_call.1} parent=11 // pred_check_branch
          %260 = sbr.rel (%p258) target = $region20
        $region19: #{tpu_custom_call.1} parent=11 // pred_region
          _
        $region20: #{tpu_custom_call.1} parent=11 // pred_fallthru
          _
        // Predicated region
        $region21: #{tpu_custom_call.1} parent=11 // pred_check
          %p261 = pneg %p109
        $region22: #{tpu_custom_call.1} parent=11 // pred_check_branch
          %263 = sbr.rel (%p261) target = $region24
        $region23: #{tpu_custom_call.1} parent=11 // pred_region
          %s265 = ssub.s32 4096, 4096
          %266 = vsyncadd [#allocation3], %s265
          %s267 = sshll.u32 [#allocation2], 4
          %s268 = int_to_ptr.vmem [resolvable:$true] %s267
          %273 = dma.hbm_to_vmem [thread:$0]  %s3, 4096, %s268, [#allocation3], 128, 128, 8
        $region24: #{tpu_custom_call.1} parent=11 // pred_fallthru
          _
        // Predicated region
        $region25: #{tpu_custom_call.1} parent=11 // pred_check
          %p274 = pneg %p130
        $region26: #{tpu_custom_call.1} parent=11 // pred_check_branch
          %276 = sbr.rel (%p274) target = $region28
        $region27: #{tpu_custom_call.1} parent=11 // pred_region
          _
        $region28: #{tpu_custom_call.1} parent=11 // pred_fallthru
          _
        // Predicated region
        $region29: #{tpu_custom_call.1} parent=11 // pred_check
          %p277 = pneg %p151
        $region30: #{tpu_custom_call.1} parent=11 // pred_check_branch
          %279 = sbr.rel (%p277) target = $region32
        $region31: #{tpu_custom_call.1} parent=11 // pred_region
          %s281 = ssub.s32 4096, 4096
          %282 = vsyncadd [#allocation6], %s281
          %s283 = sshll.u32 [#allocation5], 4
          %s284 = int_to_ptr.vmem [resolvable:$true] %s283
          %289 = dma.hbm_to_vmem [thread:$0]  %s5, 4096, %s284, [#allocation6], 128, 128, 8
        $region32: #{tpu_custom_call.1} parent=11 // pred_fallthru
          _
        // Predicated region
        $region33: #{tpu_custom_call.1} parent=11 // pred_check
          %p290 = pneg %p172
        $region34: #{tpu_custom_call.1} parent=11 // pred_check_branch
          %292 = sbr.rel (%p290) target = $region36
        $region35: #{tpu_custom_call.1} parent=11 // pred_region
          _
        $region36: #{tpu_custom_call.1} parent=11 // pred_fallthru
          _
        // Predicated region
        $region37: #{tpu_custom_call.1} parent=11 // pred_check
          %p293 = pneg %p193
        $region38: #{tpu_custom_call.1} parent=11 // pred_check_branch
          %295 = sbr.rel (%p293) target = $region40
        $region39: #{tpu_custom_call.1} parent=11 // pred_region
          %s297 = ssub.s32 2048, 2048
          %298 = vsyncadd [#allocation6], %s297
          %s299 = sshll.u32 [#allocation7], 4
          %s300 = int_to_ptr.vmem [resolvable:$true] %s299
          %305 = dma.hbm_to_vmem [thread:$0]  %s7, 2048, %s300, [#allocation6], 64, 64, 4
        $region40: #{tpu_custom_call.1} parent=11 // pred_fallthru
          _
        // Predicated region
        $region41: #{tpu_custom_call.1} parent=11 // pred_check
          %p306 = pneg %p214
        $region42: #{tpu_custom_call.1} parent=11 // pred_check_branch
          %308 = sbr.rel (%p306) target = $region44
        $region43: #{tpu_custom_call.1} parent=11 // pred_region
          _
        $region44: #{tpu_custom_call.1} parent=11 // pred_fallthru
          _
      $region12: #{tpu_custom_call.1} parent=5 // pred_fallthru
        _
      %p309 = scmp.lt.s32.totalorder %s20, 2
      // Predicated region
      $region45: #{tpu_custom_call.1} parent=5 // pred_check
        %p310 = pneg %p309
      $region46: #{tpu_custom_call.1} parent=5 // pred_check_branch
        %312 = sbr.rel (%p310) target = $region48
      $region47: #{tpu_custom_call.1} parent=5 // pred_region
        // Predicated region
        $region49: #{tpu_custom_call.1} parent=47 // pred_check
          %p313 = pneg %p40
        $region50: #{tpu_custom_call.1} parent=47 // pred_check_branch
          %315 = sbr.rel (%p313) target = $region52
        $region51: #{tpu_custom_call.1} parent=47 // pred_region
          %s316 = smul.u32 4, %s20
          %p317 = scmp.lt.s32.totalorder %s316, 7
          %s318 = scalar_select %p317, %s316, 7
          %s319 = smul.addr %s318, 8
          %s320 = scalar_lea.vmem %s0, %s319
          %s321 = smul.u32 4, %s20
        $region52: #{tpu_custom_call.1} parent=47 // pred_fallthru
          _
      $region48: #{tpu_custom_call.1} parent=5 // pred_fallthru
        _
      %p322 = scmp.le.s32.totalorder 1, %s20
      %p323 = scmp.lt.s32.totalorder %s20, 3
      %p324 = pnand %p322, %p323
      %p325 = pneg %p324
      // Predicated region
      $region53: #{tpu_custom_call.1} parent=5 // pred_check
        _
      $region54: #{tpu_custom_call.1} parent=5 // pred_check_branch
        %327 = sbr.rel (%p324) target = $region56
      $region55: #{tpu_custom_call.1} parent=5 // pred_region
        %s328 = ssub.s32 %s20, 1
        // Predicated region
        $region57: #{tpu_custom_call.1} parent=55 // pred_check
          %p329 = pneg %p109
        $region58: #{tpu_custom_call.1} parent=55 // pred_check_branch
          %331 = sbr.rel (%p329) target = $region60
        $region59: #{tpu_custom_call.1} parent=55 // pred_region
          %332 = dma.done [#allocation3], 4096
        $region60: #{tpu_custom_call.1} parent=55 // pred_fallthru
          _
        // Predicated region
        $region61: #{tpu_custom_call.1} parent=55 // pred_check
          %p333 = pneg %p151
        $region62: #{tpu_custom_call.1} parent=55 // pred_check_branch
          %335 = sbr.rel (%p333) target = $region64
        $region63: #{tpu_custom_call.1} parent=55 // pred_region
          %336 = dma.done [#allocation6], 4096
        $region64: #{tpu_custom_call.1} parent=55 // pred_fallthru
          _
        // Predicated region
        $region65: #{tpu_custom_call.1} parent=55 // pred_check
          %p337 = pneg %p193
        $region66: #{tpu_custom_call.1} parent=55 // pred_check_branch
          %339 = sbr.rel (%p337) target = $region68
        $region67: #{tpu_custom_call.1} parent=55 // pred_region
          %340 = dma.done [#allocation6], 2048
        $region68: #{tpu_custom_call.1} parent=55 // pred_fallthru
          _
        %s341 = smul.u32 4, %s25
        %p342 = scmp.lt.s32.totalorder %s341, 7
        %s343 = scalar_select %p342, %s341, 7
        %s344 = smul.addr %s343, 8
        %s345 = scalar_lea.vmem %s0, %s344
        %p346 = pneg %p46
        %p347 = pneg %p43
        %p348 = pneg %p67
        %p349 = pneg %p64
        %p350 = pneg %p88
        %p351 = pneg %p85
        %p352 = pneg %p109
        %p353 = pneg %p106
        %p354 = pneg %p130
        %p355 = pneg %p127
        %p356 = pneg %p151
        %p357 = pneg %p148
        %p358 = pneg %p172
        %p359 = pneg %p169
        %p360 = pneg %p193
        %p361 = pneg %p190
        %p362 = pneg %p214
        %p363 = pneg %p211
        %p364 = pneg %p240
        %p365 = pneg %p237
        %s366 = sand.u32 %s227, 1
        %s367 = scalar_lea.sflag [#allocation4], %s366
        %s368 = sand.u32 %s227, 1
        %s369 = smul.addr %s368, 16
        %s370 = scalar_lea.vmem [#allocation8], %s369
        %s371 = smul.u32 4, %s25
        %p372 = scmp.lt.s32.totalorder %s371, 7
        %s373 = scalar_select %p372, %s371, 7
        %s374 = smul.addr %s373, 8
        %s375 = scalar_lea.vmem %s0, %s374
        %s376 = smul.u32 4, %s25
        %s377 = smul.u32 4, %s25
        %v379 = vld [vmem:[%s375] sm:$0xff]
        %v380 = vld [vmem:[%s375 + $0x8] sm:$0xff]
        %v381 = vld [vmem:[%s375 + $0x10] sm:$0xff]
        %v382 = vld [vmem:[%s375 + $0x18] sm:$0xff]
        %v383 = vpack.c.bf16 %v380, %v379
        %v384 = vpack.c.bf16 %v382, %v381
        %v385 = vld [vmem:[%s1] sm:$0xff]
        %v386 = vld [vmem:[%s1 + $0x8] sm:$0xff]
        %v389 = vunpack.c.l.b16 %v385
        %v390 = vunpack.c.h.b16 %v385
        %v391 = vunpack.c.l.b16 %v386
        %v392 = vunpack.c.h.b16 %v386
        %v393 = vpack.c.b16 %v391, %v389
        %v394 = vpack.c.b16 %v392, %v390
        %vm397 = vcmask 130048
        %v399 = vsel %vm397, %v383, 0
        %v402 = vsel %vm397, %v384, 0
        %404 = vmatprep.subr.bf16.mxu0 %v394
        %405 = vmatpush1.bf16.msra.mxu0 %v393
        %406 = vmatprep.subr.bf16.mxu0 0
        %407 = vmatpush1.bf16.msra.mxu0 0
        %408 = vmatprep.subr.bf16.mxu0 0
        %409 = vmatpush1.bf16.msra.mxu0 0
        %410 = vmatprep.subr.bf16.mxu0 0
        %411 = vmatpush1.bf16.msra.mxu0 0
        %412 = vmatprep.subr.bf16.mxu0 0
        %413 = vmatpush1.bf16.msra.mxu0 0
        %414 = vmatprep.subr.bf16.mxu0 0
        %415 = vmatpush1.bf16.msra.mxu0 0
        %416 = vmatprep.subr.bf16.mxu0 0
        %417 = vmatpush1.bf16.msra.mxu0 0
        %418 = vmatprep.subr.bf16.mxu0 0
        %419 = vmatpush1.bf16.msra.mxu0 0
        %420 = vmatprep.subr.bf16.mxu0 0
        %421 = vmatpush1.bf16.msra.mxu0 0
        %422 = vmatprep.subr.bf16.mxu0 0
        %423 = vmatpush1.bf16.msra.mxu0 0
        %424 = vmatprep.subr.bf16.mxu0 0
        %425 = vmatpush1.bf16.msra.mxu0 0
        %426 = vmatprep.subr.bf16.mxu0 0
        %427 = vmatpush1.bf16.msra.mxu0 0
        %428 = vmatprep.subr.bf16.mxu0 0
        %429 = vmatpush1.bf16.msra.mxu0 0
        %430 = vmatprep.subr.bf16.mxu0 0
        %431 = vmatpush1.bf16.msra.mxu0 0
        %432 = vmatprep.subr.bf16.mxu0 0
        %433 = vmatpush1.bf16.msra.mxu0 0
        %434 = vmatprep.subr.bf16.mxu0 0
        %435 = vmatpush1.bf16.msra.mxu0 0
        %436 = vmatprep.mubr.bf16.mxu0 0
        %437 = vmatmul.mubr.bf16.gmra.mrb[0].mxu0 %v399
        %v438 = vpop.f32.mrb[0].mxu0
        %v439 = vadd.f32 0.0, %v438
        %v440 = vpop.f32.mrb[0].mxu0
        %v441 = vadd.f32 0.0, %v440
        %v442 = vpop.f32.mrb[0].mxu0
        %v443 = vadd.f32 0.0, %v442
        %v444 = vpop.f32.mrb[0].mxu0
        %v445 = vadd.f32 0.0, %v444
        %446 = vmatprep.mubr.bf16.mxu0 0
        %447 = vmatmul.mubr.bf16.gmra.mrb[0].mxu0 %v402
        %v448 = vpop.f32.mrb[0].mxu0
        %v449 = vadd.f32 0.0, %v448
        %v450 = vpop.f32.mrb[0].mxu0
        %v451 = vadd.f32 0.0, %v450
        %v452 = vpop.f32.mrb[0].mxu0
        %v453 = vadd.f32 0.0, %v452
        %v454 = vpop.f32.mrb[0].mxu0
        %v455 = vadd.f32 0.0, %v454
        %456 = vdwg.mxu0
        %v457 = vpack.c.bf16 %v443, %v439
        %v458 = vpack.c.bf16 %v445, %v441
        %v459 = vpack.c.bf16 %v453, %v449
        %v460 = vpack.c.bf16 %v455, %v451
        %v461 = vld [vmem:[%s2] sm:$0x3]
        %v464 = vunpack.c.l.s4 1966171168
        %v465 = vunpack.c.0.s8 %v464
        %v466 = vlaneseq
        %v467 = vshrl.u32 %v466, 7
        %v468 = vsub.s32 %v465, %v467
        %v469 = vrot.slane %v461, %v468
        %v470 = vcombine.high %v469, %v469
        %v472 = vunpack.c.l.s4 1966171168
        %v473 = vunpack.c.0.s8 %v472
        %v474 = vlaneseq
        %v475 = vshrl.u32 %v474, 7
        %v476 = vsub.s32 %v473, %v475
        %v477 = vrot.slane %v469, %v476
        %v479 = vunpack.c.l.s4 1966171168
        %v480 = vunpack.c.0.s8 %v479
        %v481 = vlaneseq
        %v482 = vshrl.u32 %v481, 7
        %v483 = vsub.s32 %v480, %v482
        %v484 = vrot.slane %v470, %v483
        %v486 = vpack.i.b16 %v477, %v477
        %v488 = vlaneseq
        %v489 = vshrl.u32 %v488, 7
        %v490 = vsub.s32 0, %v489
        %v491 = vrot.slane %v486, %v490
        %v493 = vpack.i.b16 %v484, %v484
        %v495 = vlaneseq
        %v496 = vshrl.u32 %v495, 7
        %v497 = vsub.s32 0, %v496
        %v498 = vrot.slane %v493, %v497
        %v499 = vadd.bf16 %v457, %v491
        %v500 = vadd.bf16 %v458, %v498
        %v501 = vadd.bf16 %v459, %v491
        %v502 = vadd.bf16 %v460, %v498
        %v503 = vmax.bf16 %v499, 0
        %v504 = vmax.bf16 %v500, 0
        %v505 = vmax.bf16 %v501, 0
        %v506 = vmax.bf16 %v502, 0
        %v507 = vld [vmem:[#allocation2] sm:$0xff]
        %v508 = vld [vmem:[#allocation2 + $0x8] sm:$0xff]
        %v509 = vld [vmem:[#allocation2 + $0x10] sm:$0xff]
        %v510 = vld [vmem:[#allocation2 + $0x18] sm:$0xff]
        %v511 = vld [vmem:[#allocation2 + $0x20] sm:$0xff]
        %v512 = vld [vmem:[#allocation2 + $0x28] sm:$0xff]
        %v513 = vld [vmem:[#allocation2 + $0x30] sm:$0xff]
        %v514 = vld [vmem:[#allocation2 + $0x38] sm:$0xff]
        %v515 = vld [vmem:[#allocation2 + $0x40] sm:$0xff]
        %v516 = vld [vmem:[#allocation2 + $0x48] sm:$0xff]
        %v517 = vld [vmem:[#allocation2 + $0x50] sm:$0xff]
        %v518 = vld [vmem:[#allocation2 + $0x58] sm:$0xff]
        %v519 = vld [vmem:[#allocation2 + $0x60] sm:$0xff]
        %v520 = vld [vmem:[#allocation2 + $0x68] sm:$0xff]
        %v521 = vld [vmem:[#allocation2 + $0x70] sm:$0xff]
        %v522 = vld [vmem:[#allocation2 + $0x78] sm:$0xff]
        %v523 = vld [vmem:[#allocation2 + $0x80] sm:$0xff]
        %v524 = vld [vmem:[#allocation2 + $0x88] sm:$0xff]
        %v525 = vld [vmem:[#allocation2 + $0x90] sm:$0xff]
        %v526 = vld [vmem:[#allocation2 + $0x98] sm:$0xff]
        %v527 = vld [vmem:[#allocation2 + $0xa0] sm:$0xff]
        %v528 = vld [vmem:[#allocation2 + $0xa8] sm:$0xff]
        %v529 = vld [vmem:[#allocation2 + $0xb0] sm:$0xff]
        %v530 = vld [vmem:[#allocation2 + $0xb8] sm:$0xff]
        %v531 = vld [vmem:[#allocation2 + $0xc0] sm:$0xff]
        %v532 = vld [vmem:[#allocation2 + $0xc8] sm:$0xff]
        %v533 = vld [vmem:[#allocation2 + $0xd0] sm:$0xff]
        %v534 = vld [vmem:[#allocation2 + $0xd8] sm:$0xff]
        %v535 = vld [vmem:[#allocation2 + $0xe0] sm:$0xff]
        %v536 = vld [vmem:[#allocation2 + $0xe8] sm:$0xff]
        %v537 = vld [vmem:[#allocation2 + $0xf0] sm:$0xff]
        %v538 = vld [vmem:[#allocation2 + $0xf8] sm:$0xff]
        %v571 = vunpack.c.l.b16 %v507
        %v572 = vunpack.c.h.b16 %v507
        %v573 = vunpack.c.l.b16 %v508
        %v574 = vunpack.c.h.b16 %v508
        %v575 = vunpack.c.l.b16 %v509
        %v576 = vunpack.c.h.b16 %v509
        %v577 = vunpack.c.l.b16 %v510
        %v578 = vunpack.c.h.b16 %v510
        %v579 = vunpack.c.l.b16 %v511
        %v580 = vunpack.c.h.b16 %v511
        %v581 = vunpack.c.l.b16 %v512
        %v582 = vunpack.c.h.b16 %v512
        %v583 = vunpack.c.l.b16 %v513
        %v584 = vunpack.c.h.b16 %v513
        %v585 = vunpack.c.l.b16 %v514
        %v586 = vunpack.c.h.b16 %v514
        %v587 = vunpack.c.l.b16 %v515
        %v588 = vunpack.c.h.b16 %v515
        %v589 = vunpack.c.l.b16 %v516
        %v590 = vunpack.c.h.b16 %v516
        %v591 = vunpack.c.l.b16 %v517
        %v592 = vunpack.c.h.b16 %v517
        %v593 = vunpack.c.l.b16 %v518
        %v594 = vunpack.c.h.b16 %v518
        %v595 = vunpack.c.l.b16 %v519
        %v596 = vunpack.c.h.b16 %v519
        %v597 = vunpack.c.l.b16 %v520
        %v598 = vunpack.c.h.b16 %v520
        %v599 = vunpack.c.l.b16 %v521
        %v600 = vunpack.c.h.b16 %v521
        %v601 = vunpack.c.l.b16 %v522
        %v602 = vunpack.c.h.b16 %v522
        %v603 = vunpack.c.l.b16 %v523
        %v604 = vunpack.c.h.b16 %v523
        %v605 = vunpack.c.l.b16 %v524
        %v606 = vunpack.c.h.b16 %v524
        %v607 = vunpack.c.l.b16 %v525
        %v608 = vunpack.c.h.b16 %v525
        %v609 = vunpack.c.l.b16 %v526
        %v610 = vunpack.c.h.b16 %v526
        %v611 = vunpack.c.l.b16 %v527
        %v612 = vunpack.c.h.b16 %v527
        %v613 = vunpack.c.l.b16 %v528
        %v614 = vunpack.c.h.b16 %v528
        %v615 = vunpack.c.l.b16 %v529
        %v616 = vunpack.c.h.b16 %v529
        %v617 = vunpack.c.l.b16 %v530
        %v618 = vunpack.c.h.b16 %v530
        %v619 = vunpack.c.l.b16 %v531
        %v620 = vunpack.c.h.b16 %v531
        %v621 = vunpack.c.l.b16 %v532
        %v622 = vunpack.c.h.b16 %v532
        %v623 = vunpack.c.l.b16 %v533
        %v624 = vunpack.c.h.b16 %v533
        %v625 = vunpack.c.l.b16 %v534
        %v626 = vunpack.c.h.b16 %v534
        %v627 = vunpack.c.l.b16 %v535
        %v628 = vunpack.c.h.b16 %v535
        %v629 = vunpack.c.l.b16 %v536
        %v630 = vunpack.c.h.b16 %v536
        %v631 = vunpack.c.l.b16 %v537
        %v632 = vunpack.c.h.b16 %v537
        %v633 = vunpack.c.l.b16 %v538
        %v634 = vunpack.c.h.b16 %v538
        %v635 = vpack.c.b16 %v573, %v571
        %v636 = vpack.c.b16 %v574, %v572
        %v637 = vpack.c.b16 %v577, %v575
        %v638 = vpack.c.b16 %v578, %v576
        %v639 = vpack.c.b16 %v581, %v579
        %v640 = vpack.c.b16 %v582, %v580
        %v641 = vpack.c.b16 %v585, %v583
        %v642 = vpack.c.b16 %v586, %v584
        %v643 = vpack.c.b16 %v589, %v587
        %v644 = vpack.c.b16 %v590, %v588
        %v645 = vpack.c.b16 %v593, %v591
        %v646 = vpack.c.b16 %v594, %v592
        %v647 = vpack.c.b16 %v597, %v595
        %v648 = vpack.c.b16 %v598, %v596
        %v649 = vpack.c.b16 %v601, %v599
        %v650 = vpack.c.b16 %v602, %v600
        %v651 = vpack.c.b16 %v605, %v603
        %v652 = vpack.c.b16 %v606, %v604
        %v653 = vpack.c.b16 %v609, %v607
        %v654 = vpack.c.b16 %v610, %v608
        %v655 = vpack.c.b16 %v613, %v611
        %v656 = vpack.c.b16 %v614, %v612
        %v657 = vpack.c.b16 %v617, %v615
        %v658 = vpack.c.b16 %v618, %v616
        %v659 = vpack.c.b16 %v621, %v619
        %v660 = vpack.c.b16 %v622, %v620
        %v661 = vpack.c.b16 %v625, %v623
        %v662 = vpack.c.b16 %v626, %v624
        %v663 = vpack.c.b16 %v629, %v627
        %v664 = vpack.c.b16 %v630, %v628
        %v665 = vpack.c.b16 %v633, %v631
        %v666 = vpack.c.b16 %v634, %v632
        %699 = vmatprep.subr.bf16.mxu0 %v636
        %700 = vmatpush1.bf16.msra.mxu0 %v635
        %701 = vmatprep.subr.bf16.mxu0 %v638
        %702 = vmatpush1.bf16.msra.mxu0 %v637
        %703 = vmatprep.subr.bf16.mxu0 %v640
        %704 = vmatpush1.bf16.msra.mxu0 %v639
        %705 = vmatprep.subr.bf16.mxu0 %v642
        %706 = vmatpush1.bf16.msra.mxu0 %v641
        %707 = vmatprep.subr.bf16.mxu0 %v644
        %708 = vmatpush1.bf16.msra.mxu0 %v643
        %709 = vmatprep.subr.bf16.mxu0 %v646
        %710 = vmatpush1.bf16.msra.mxu0 %v645
        %711 = vmatprep.subr.bf16.mxu0 %v648
        %712 = vmatpush1.bf16.msra.mxu0 %v647
        %713 = vmatprep.subr.bf16.mxu0 %v650
        %714 = vmatpush1.bf16.msra.mxu0 %v649
        %715 = vmatprep.subr.bf16.mxu0 %v652
        %716 = vmatpush1.bf16.msra.mxu0 %v651
        %717 = vmatprep.subr.bf16.mxu0 %v654
        %718 = vmatpush1.bf16.msra.mxu0 %v653
        %719 = vmatprep.subr.bf16.mxu0 %v656
        %720 = vmatpush1.bf16.msra.mxu0 %v655
        %721 = vmatprep.subr.bf16.mxu0 %v658
        %722 = vmatpush1.bf16.msra.mxu0 %v657
        %723 = vmatprep.subr.bf16.mxu0 %v660
        %724 = vmatpush1.bf16.msra.mxu0 %v659
        %725 = vmatprep.subr.bf16.mxu0 %v662
        %726 = vmatpush1.bf16.msra.mxu0 %v661
        %727 = vmatprep.subr.bf16.mxu0 %v664
        %728 = vmatpush1.bf16.msra.mxu0 %v663
        %729 = vmatprep.subr.bf16.mxu0 %v666
        %730 = vmatpush1.bf16.msra.mxu0 %v665
        %731 = vmatprep.mubr.bf16.mxu0 %v504
        %732 = vmatmul.mubr.bf16.gmra.mrb[0].mxu0 %v503
        %v733 = vpop.f32.mrb[0].mxu0
        %v734 = vadd.f32 0.0, %v733
        %v735 = vpop.f32.mrb[0].mxu0
        %v736 = vadd.f32 0.0, %v735
        %v737 = vpop.f32.mrb[0].mxu0
        %v738 = vadd.f32 0.0, %v737
        %v739 = vpop.f32.mrb[0].mxu0
        %v740 = vadd.f32 0.0, %v739
        %741 = vmatprep.mubr.bf16.mxu0 %v506
        %742 = vmatmul.mubr.bf16.gmra.mrb[0].mxu0 %v505
        %v743 = vpop.f32.mrb[0].mxu0
        %v744 = vadd.f32 0.0, %v743
        %v745 = vpop.f32.mrb[0].mxu0
        %v746 = vadd.f32 0.0, %v745
        %v747 = vpop.f32.mrb[0].mxu0
        %v748 = vadd.f32 0.0, %v747
        %v749 = vpop.f32.mrb[0].mxu0
        %v750 = vadd.f32 0.0, %v749
        %751 = vdwg.mxu0
        %v752 = vpack.c.bf16 %v738, %v734
        %v753 = vpack.c.bf16 %v740, %v736
        %v754 = vpack.c.bf16 %v748, %v744
        %v755 = vpack.c.bf16 %v750, %v746
        %v756 = vld [vmem:[%s4] sm:$0x3]
        %v759 = vunpack.c.l.s4 1966171168
        %v760 = vunpack.c.0.s8 %v759
        %v761 = vlaneseq
        %v762 = vshrl.u32 %v761, 7
        %v763 = vsub.s32 %v760, %v762
        %v764 = vrot.slane %v756, %v763
        %v765 = vcombine.high %v764, %v764
        %v767 = vunpack.c.l.s4 1966171168
        %v768 = vunpack.c.0.s8 %v767
        %v769 = vlaneseq
        %v770 = vshrl.u32 %v769, 7
        %v771 = vsub.s32 %v768, %v770
        %v772 = vrot.slane %v764, %v771
        %v774 = vunpack.c.l.s4 1966171168
        %v775 = vunpack.c.0.s8 %v774
        %v776 = vlaneseq
        %v777 = vshrl.u32 %v776, 7
        %v778 = vsub.s32 %v775, %v777
        %v779 = vrot.slane %v765, %v778
        %v781 = vpack.i.b16 %v772, %v772
        %v783 = vlaneseq
        %v784 = vshrl.u32 %v783, 7
        %v785 = vsub.s32 0, %v784
        %v786 = vrot.slane %v781, %v785
        %v788 = vpack.i.b16 %v779, %v779
        %v790 = vlaneseq
        %v791 = vshrl.u32 %v790, 7
        %v792 = vsub.s32 0, %v791
        %v793 = vrot.slane %v788, %v792
        %v794 = vadd.bf16 %v752, %v786
        %v795 = vadd.bf16 %v753, %v793
        %v796 = vadd.bf16 %v754, %v786
        %v797 = vadd.bf16 %v755, %v793
        %v798 = vmax.bf16 %v794, 0
        %v799 = vmax.bf16 %v795, 0
        %v800 = vmax.bf16 %v796, 0
        %v801 = vmax.bf16 %v797, 0
        %v802 = vld [vmem:[#allocation5] sm:$0xff]
        %v803 = vld [vmem:[#allocation5 + $0x8] sm:$0xff]
        %v804 = vld [vmem:[#allocation5 + $0x10] sm:$0xff]
        %v805 = vld [vmem:[#allocation5 + $0x18] sm:$0xff]
        %v806 = vld [vmem:[#allocation5 + $0x20] sm:$0xff]
        %v807 = vld [vmem:[#allocation5 + $0x28] sm:$0xff]
        %v808 = vld [vmem:[#allocation5 + $0x30] sm:$0xff]
        %v809 = vld [vmem:[#allocation5 + $0x38] sm:$0xff]
        %v810 = vld [vmem:[#allocation5 + $0x40] sm:$0xff]
        %v811 = vld [vmem:[#allocation5 + $0x48] sm:$0xff]
        %v812 = vld [vmem:[#allocation5 + $0x50] sm:$0xff]
        %v813 = vld [vmem:[#allocation5 + $0x58] sm:$0xff]
        %v814 = vld [vmem:[#allocation5 + $0x60] sm:$0xff]
        %v815 = vld [vmem:[#allocation5 + $0x68] sm:$0xff]
        %v816 = vld [vmem:[#allocation5 + $0x70] sm:$0xff]
        %v817 = vld [vmem:[#allocation5 + $0x78] sm:$0xff]
        %v818 = vld [vmem:[#allocation5 + $0x80] sm:$0xff]
        %v819 = vld [vmem:[#allocation5 + $0x88] sm:$0xff]
        %v820 = vld [vmem:[#allocation5 + $0x90] sm:$0xff]
        %v821 = vld [vmem:[#allocation5 + $0x98] sm:$0xff]
        %v822 = vld [vmem:[#allocation5 + $0xa0] sm:$0xff]
        %v823 = vld [vmem:[#allocation5 + $0xa8] sm:$0xff]
        %v824 = vld [vmem:[#allocation5 + $0xb0] sm:$0xff]
        %v825 = vld [vmem:[#allocation5 + $0xb8] sm:$0xff]
        %v826 = vld [vmem:[#allocation5 + $0xc0] sm:$0xff]
        %v827 = vld [vmem:[#allocation5 + $0xc8] sm:$0xff]
        %v828 = vld [vmem:[#allocation5 + $0xd0] sm:$0xff]
        %v829 = vld [vmem:[#allocation5 + $0xd8] sm:$0xff]
        %v830 = vld [vmem:[#allocation5 + $0xe0] sm:$0xff]
        %v831 = vld [vmem:[#allocation5 + $0xe8] sm:$0xff]
        %v832 = vld [vmem:[#allocation5 + $0xf0] sm:$0xff]
        %v833 = vld [vmem:[#allocation5 + $0xf8] sm:$0xff]
        %v866 = vunpack.c.l.b16 %v802
        %v867 = vunpack.c.h.b16 %v802
        %v868 = vunpack.c.l.b16 %v803
        %v869 = vunpack.c.h.b16 %v803
        %v870 = vunpack.c.l.b16 %v804
        %v871 = vunpack.c.h.b16 %v804
        %v872 = vunpack.c.l.b16 %v805
        %v873 = vunpack.c.h.b16 %v805
        %v874 = vunpack.c.l.b16 %v806
        %v875 = vunpack.c.h.b16 %v806
        %v876 = vunpack.c.l.b16 %v807
        %v877 = vunpack.c.h.b16 %v807
        %v878 = vunpack.c.l.b16 %v808
        %v879 = vunpack.c.h.b16 %v808
        %v880 = vunpack.c.l.b16 %v809
        %v881 = vunpack.c.h.b16 %v809
        %v882 = vunpack.c.l.b16 %v810
        %v883 = vunpack.c.h.b16 %v810
        %v884 = vunpack.c.l.b16 %v811
        %v885 = vunpack.c.h.b16 %v811
        %v886 = vunpack.c.l.b16 %v812
        %v887 = vunpack.c.h.b16 %v812
        %v888 = vunpack.c.l.b16 %v813
        %v889 = vunpack.c.h.b16 %v813
        %v890 = vunpack.c.l.b16 %v814
        %v891 = vunpack.c.h.b16 %v814
        %v892 = vunpack.c.l.b16 %v815
        %v893 = vunpack.c.h.b16 %v815
        %v894 = vunpack.c.l.b16 %v816
        %v895 = vunpack.c.h.b16 %v816
        %v896 = vunpack.c.l.b16 %v817
        %v897 = vunpack.c.h.b16 %v817
        %v898 = vunpack.c.l.b16 %v818
        %v899 = vunpack.c.h.b16 %v818
        %v900 = vunpack.c.l.b16 %v819
        %v901 = vunpack.c.h.b16 %v819
        %v902 = vunpack.c.l.b16 %v820
        %v903 = vunpack.c.h.b16 %v820
        %v904 = vunpack.c.l.b16 %v821
        %v905 = vunpack.c.h.b16 %v821
        %v906 = vunpack.c.l.b16 %v822
        %v907 = vunpack.c.h.b16 %v822
        %v908 = vunpack.c.l.b16 %v823
        %v909 = vunpack.c.h.b16 %v823
        %v910 = vunpack.c.l.b16 %v824
        %v911 = vunpack.c.h.b16 %v824
        %v912 = vunpack.c.l.b16 %v825
        %v913 = vunpack.c.h.b16 %v825
        %v914 = vunpack.c.l.b16 %v826
        %v915 = vunpack.c.h.b16 %v826
        %v916 = vunpack.c.l.b16 %v827
        %v917 = vunpack.c.h.b16 %v827
        %v918 = vunpack.c.l.b16 %v828
        %v919 = vunpack.c.h.b16 %v828
        %v920 = vunpack.c.l.b16 %v829
        %v921 = vunpack.c.h.b16 %v829
        %v922 = vunpack.c.l.b16 %v830
        %v923 = vunpack.c.h.b16 %v830
        %v924 = vunpack.c.l.b16 %v831
        %v925 = vunpack.c.h.b16 %v831
        %v926 = vunpack.c.l.b16 %v832
        %v927 = vunpack.c.h.b16 %v832
        %v928 = vunpack.c.l.b16 %v833
        %v929 = vunpack.c.h.b16 %v833
        %v930 = vpack.c.b16 %v868, %v866
        %v931 = vpack.c.b16 %v869, %v867
        %v932 = vpack.c.b16 %v872, %v870
        %v933 = vpack.c.b16 %v873, %v871
        %v934 = vpack.c.b16 %v876, %v874
        %v935 = vpack.c.b16 %v877, %v875
        %v936 = vpack.c.b16 %v880, %v878
        %v937 = vpack.c.b16 %v881, %v879
        %v938 = vpack.c.b16 %v884, %v882
        %v939 = vpack.c.b16 %v885, %v883
        %v940 = vpack.c.b16 %v888, %v886
        %v941 = vpack.c.b16 %v889, %v887
        %v942 = vpack.c.b16 %v892, %v890
        %v943 = vpack.c.b16 %v893, %v891
        %v944 = vpack.c.b16 %v896, %v894
        %v945 = vpack.c.b16 %v897, %v895
        %v946 = vpack.c.b16 %v900, %v898
        %v947 = vpack.c.b16 %v901, %v899
        %v948 = vpack.c.b16 %v904, %v902
        %v949 = vpack.c.b16 %v905, %v903
        %v950 = vpack.c.b16 %v908, %v906
        %v951 = vpack.c.b16 %v909, %v907
        %v952 = vpack.c.b16 %v912, %v910
        %v953 = vpack.c.b16 %v913, %v911
        %v954 = vpack.c.b16 %v916, %v914
        %v955 = vpack.c.b16 %v917, %v915
        %v956 = vpack.c.b16 %v920, %v918
        %v957 = vpack.c.b16 %v921, %v919
        %v958 = vpack.c.b16 %v924, %v922
        %v959 = vpack.c.b16 %v925, %v923
        %v960 = vpack.c.b16 %v928, %v926
        %v961 = vpack.c.b16 %v929, %v927
        %994 = vmatprep.subr.bf16.mxu0 %v931
        %995 = vmatpush1.bf16.msra.mxu0 %v930
        %996 = vmatprep.subr.bf16.mxu0 %v933
        %997 = vmatpush1.bf16.msra.mxu0 %v932
        %998 = vmatprep.subr.bf16.mxu0 %v935
        %999 = vmatpush1.bf16.msra.mxu0 %v934
        %1000 = vmatprep.subr.bf16.mxu0 %v937
        %1001 = vmatpush1.bf16.msra.mxu0 %v936
        %1002 = vmatprep.subr.bf16.mxu0 %v939
        %1003 = vmatpush1.bf16.msra.mxu0 %v938
        %1004 = vmatprep.subr.bf16.mxu0 %v941
        %1005 = vmatpush1.bf16.msra.mxu0 %v940
        %1006 = vmatprep.subr.bf16.mxu0 %v943
        %1007 = vmatpush1.bf16.msra.mxu0 %v942
        %1008 = vmatprep.subr.bf16.mxu0 %v945
        %1009 = vmatpush1.bf16.msra.mxu0 %v944
        %1010 = vmatprep.subr.bf16.mxu0 %v947
        %1011 = vmatpush1.bf16.msra.mxu0 %v946
        %1012 = vmatprep.subr.bf16.mxu0 %v949
        %1013 = vmatpush1.bf16.msra.mxu0 %v948
        %1014 = vmatprep.subr.bf16.mxu0 %v951
        %1015 = vmatpush1.bf16.msra.mxu0 %v950
        %1016 = vmatprep.subr.bf16.mxu0 %v953
        %1017 = vmatpush1.bf16.msra.mxu0 %v952
        %1018 = vmatprep.subr.bf16.mxu0 %v955
        %1019 = vmatpush1.bf16.msra.mxu0 %v954
        %1020 = vmatprep.subr.bf16.mxu0 %v957
        %1021 = vmatpush1.bf16.msra.mxu0 %v956
        %1022 = vmatprep.subr.bf16.mxu0 %v959
        %1023 = vmatpush1.bf16.msra.mxu0 %v958
        %1024 = vmatprep.subr.bf16.mxu0 %v961
        %1025 = vmatpush1.bf16.msra.mxu0 %v960
        %1026 = vmatprep.mubr.bf16.mxu0 %v799
        %1027 = vmatmul.mubr.bf16.gmra.mrb[0].mxu0 %v798
        %v1028 = vpop.f32.mrb[0].mxu0
        %v1029 = vadd.f32 0.0, %v1028
        %v1030 = vpop.f32.mrb[0].mxu0
        %v1031 = vadd.f32 0.0, %v1030
        %v1032 = vpop.f32.mrb[0].mxu0
        %v1033 = vadd.f32 0.0, %v1032
        %v1034 = vpop.f32.mrb[0].mxu0
        %v1035 = vadd.f32 0.0, %v1034
        %1036 = vmatprep.mubr.bf16.mxu0 %v801
        %1037 = vmatmul.mubr.bf16.gmra.mrb[0].mxu0 %v800
        %v1038 = vpop.f32.mrb[0].mxu0
        %v1039 = vadd.f32 0.0, %v1038
        %v1040 = vpop.f32.mrb[0].mxu0
        %v1041 = vadd.f32 0.0, %v1040
        %v1042 = vpop.f32.mrb[0].mxu0
        %v1043 = vadd.f32 0.0, %v1042
        %v1044 = vpop.f32.mrb[0].mxu0
        %v1045 = vadd.f32 0.0, %v1044
        %1046 = vdwg.mxu0
        %v1047 = vpack.c.bf16 %v1033, %v1029
        %v1048 = vpack.c.bf16 %v1035, %v1031
        %v1049 = vpack.c.bf16 %v1043, %v1039
        %v1050 = vpack.c.bf16 %v1045, %v1041
        %v1051 = vld [vmem:[%s6] sm:$0x3]
        %v1054 = vunpack.c.l.s4 1966171168
        %v1055 = vunpack.c.0.s8 %v1054
        %v1056 = vlaneseq
        %v1057 = vshrl.u32 %v1056, 7
        %v1058 = vsub.s32 %v1055, %v1057
        %v1059 = vrot.slane %v1051, %v1058
        %v1060 = vcombine.high %v1059, %v1059
        %v1062 = vunpack.c.l.s4 1966171168
        %v1063 = vunpack.c.0.s8 %v1062
        %v1064 = vlaneseq
        %v1065 = vshrl.u32 %v1064, 7
        %v1066 = vsub.s32 %v1063, %v1065
        %v1067 = vrot.slane %v1059, %v1066
        %v1069 = vunpack.c.l.s4 1966171168
        %v1070 = vunpack.c.0.s8 %v1069
        %v1071 = vlaneseq
        %v1072 = vshrl.u32 %v1071, 7
        %v1073 = vsub.s32 %v1070, %v1072
        %v1074 = vrot.slane %v1060, %v1073
        %v1076 = vpack.i.b16 %v1067, %v1067
        %v1078 = vlaneseq
        %v1079 = vshrl.u32 %v1078, 7
        %v1080 = vsub.s32 0, %v1079
        %v1081 = vrot.slane %v1076, %v1080
        %v1083 = vpack.i.b16 %v1074, %v1074
        %v1085 = vlaneseq
        %v1086 = vshrl.u32 %v1085, 7
        %v1087 = vsub.s32 0, %v1086
        %v1088 = vrot.slane %v1083, %v1087
        %v1089 = vadd.bf16 %v1047, %v1081
        %v1090 = vadd.bf16 %v1048, %v1088
        %v1091 = vadd.bf16 %v1049, %v1081
        %v1092 = vadd.bf16 %v1050, %v1088
        %v1093 = vmax.bf16 %v1089, 0
        %v1094 = vmax.bf16 %v1090, 0
        %v1095 = vmax.bf16 %v1091, 0
        %v1096 = vmax.bf16 %v1092, 0
        %v1097 = vld [vmem:[#allocation7] sm:$0xf]
        %v1098 = vld [vmem:[#allocation7 + $0x4] sm:$0xf]
        %v1099 = vld [vmem:[#allocation7 + $0x8] sm:$0xf]
        %v1100 = vld [vmem:[#allocation7 + $0xc] sm:$0xf]
        %v1101 = vld [vmem:[#allocation7 + $0x10] sm:$0xf]
        %v1102 = vld [vmem:[#allocation7 + $0x14] sm:$0xf]
        %v1103 = vld [vmem:[#allocation7 + $0x18] sm:$0xf]
        %v1104 = vld [vmem:[#allocation7 + $0x1c] sm:$0xf]
        %v1105 = vld [vmem:[#allocation7 + $0x20] sm:$0xf]
        %v1106 = vld [vmem:[#allocation7 + $0x24] sm:$0xf]
        %v1107 = vld [vmem:[#allocation7 + $0x28] sm:$0xf]
        %v1108 = vld [vmem:[#allocation7 + $0x2c] sm:$0xf]
        %v1109 = vld [vmem:[#allocation7 + $0x30] sm:$0xf]
        %v1110 = vld [vmem:[#allocation7 + $0x34] sm:$0xf]
        %v1111 = vld [vmem:[#allocation7 + $0x38] sm:$0xf]
        %v1112 = vld [vmem:[#allocation7 + $0x3c] sm:$0xf]
        %v1113 = vld [vmem:[#allocation7 + $0x40] sm:$0xf]
        %v1114 = vld [vmem:[#allocation7 + $0x44] sm:$0xf]
        %v1115 = vld [vmem:[#allocation7 + $0x48] sm:$0xf]
        %v1116 = vld [vmem:[#allocation7 + $0x4c] sm:$0xf]
        %v1117 = vld [vmem:[#allocation7 + $0x50] sm:$0xf]
        %v1118 = vld [vmem:[#allocation7 + $0x54] sm:$0xf]
        %v1119 = vld [vmem:[#allocation7 + $0x58] sm:$0xf]
        %v1120 = vld [vmem:[#allocation7 + $0x5c] sm:$0xf]
        %v1121 = vld [vmem:[#allocation7 + $0x60] sm:$0xf]
        %v1122 = vld [vmem:[#allocation7 + $0x64] sm:$0xf]
        %v1123 = vld [vmem:[#allocation7 + $0x68] sm:$0xf]
        %v1124 = vld [vmem:[#allocation7 + $0x6c] sm:$0xf]
        %v1125 = vld [vmem:[#allocation7 + $0x70] sm:$0xf]
        %v1126 = vld [vmem:[#allocation7 + $0x74] sm:$0xf]
        %v1127 = vld [vmem:[#allocation7 + $0x78] sm:$0xf]
        %v1128 = vld [vmem:[#allocation7 + $0x7c] sm:$0xf]
        %v1129 = vld [vmem:[%s8] sm:$0x1]
        %v1131 = vlaneseq
        %v1132 = vshrl.u32 %v1131, 7
        %v1133 = vsub.s32 0, %v1132
        %v1134 = vrot.slane %v1129, %v1133
        %v1168 = vunpack.c.l.b16 %v1097
        %v1169 = vunpack.c.l.b16 %v1098
        %v1170 = vunpack.c.l.b16 %v1099
        %v1171 = vunpack.c.l.b16 %v1100
        %v1172 = vunpack.c.l.b16 %v1101
        %v1173 = vunpack.c.l.b16 %v1102
        %v1174 = vunpack.c.l.b16 %v1103
        %v1175 = vunpack.c.l.b16 %v1104
        %v1176 = vunpack.c.l.b16 %v1105
        %v1177 = vunpack.c.l.b16 %v1106
        %v1178 = vunpack.c.l.b16 %v1107
        %v1179 = vunpack.c.l.b16 %v1108
        %v1180 = vunpack.c.l.b16 %v1109
        %v1181 = vunpack.c.l.b16 %v1110
        %v1182 = vunpack.c.l.b16 %v1111
        %v1183 = vunpack.c.l.b16 %v1112
        %v1184 = vunpack.c.l.b16 %v1113
        %v1185 = vunpack.c.l.b16 %v1114
        %v1186 = vunpack.c.l.b16 %v1115
        %v1187 = vunpack.c.l.b16 %v1116
        %v1188 = vunpack.c.l.b16 %v1117
        %v1189 = vunpack.c.l.b16 %v1118
        %v1190 = vunpack.c.l.b16 %v1119
        %v1191 = vunpack.c.l.b16 %v1120
        %v1192 = vunpack.c.l.b16 %v1121
        %v1193 = vunpack.c.l.b16 %v1122
        %v1194 = vunpack.c.l.b16 %v1123
        %v1195 = vunpack.c.l.b16 %v1124
        %v1196 = vunpack.c.l.b16 %v1125
        %v1197 = vunpack.c.l.b16 %v1126
        %v1198 = vunpack.c.l.b16 %v1127
        %v1199 = vunpack.c.l.b16 %v1128
        %v1200 = vpack.c.b16 %v1169, %v1168
        %v1201 = vpack.c.b16 %v1171, %v1170
        %v1202 = vpack.c.b16 %v1173, %v1172
        %v1203 = vpack.c.b16 %v1175, %v1174
        %v1204 = vpack.c.b16 %v1177, %v1176
        %v1205 = vpack.c.b16 %v1179, %v1178
        %v1206 = vpack.c.b16 %v1181, %v1180
        %v1207 = vpack.c.b16 %v1183, %v1182
        %v1208 = vpack.c.b16 %v1185, %v1184
        %v1209 = vpack.c.b16 %v1187, %v1186
        %v1210 = vpack.c.b16 %v1189, %v1188
        %v1211 = vpack.c.b16 %v1191, %v1190
        %v1212 = vpack.c.b16 %v1193, %v1192
        %v1213 = vpack.c.b16 %v1195, %v1194
        %v1214 = vpack.c.b16 %v1197, %v1196
        %v1215 = vpack.c.b16 %v1199, %v1198
        %1232 = vmatprep.subr.bf16.mxu0 0
        %1233 = vmatpush1.bf16.msra.mxu0 %v1200
        %1234 = vmatprep.subr.bf16.mxu0 0
        %1235 = vmatpush1.bf16.msra.mxu0 %v1201
        %1236 = vmatprep.subr.bf16.mxu0 0
        %1237 = vmatpush1.bf16.msra.mxu0 %v1202
        %1238 = vmatprep.subr.bf16.mxu0 0
        %1239 = vmatpush1.bf16.msra.mxu0 %v1203
        %1240 = vmatprep.subr.bf16.mxu0 0
        %1241 = vmatpush1.bf16.msra.mxu0 %v1204
        %1242 = vmatprep.subr.bf16.mxu0 0
        %1243 = vmatpush1.bf16.msra.mxu0 %v1205
        %1244 = vmatprep.subr.bf16.mxu0 0
        %1245 = vmatpush1.bf16.msra.mxu0 %v1206
        %1246 = vmatprep.subr.bf16.mxu0 0
        %1247 = vmatpush1.bf16.msra.mxu0 %v1207
        %1248 = vmatprep.subr.bf16.mxu0 0
        %1249 = vmatpush1.bf16.msra.mxu0 %v1208
        %1250 = vmatprep.subr.bf16.mxu0 0
        %1251 = vmatpush1.bf16.msra.mxu0 %v1209
        %1252 = vmatprep.subr.bf16.mxu0 0
        %1253 = vmatpush1.bf16.msra.mxu0 %v1210
        %1254 = vmatprep.subr.bf16.mxu0 0
        %1255 = vmatpush1.bf16.msra.mxu0 %v1211
        %1256 = vmatprep.subr.bf16.mxu0 0
        %1257 = vmatpush1.bf16.msra.mxu0 %v1212
        %1258 = vmatprep.subr.bf16.mxu0 0
        %1259 = vmatpush1.bf16.msra.mxu0 %v1213
        %1260 = vmatprep.subr.bf16.mxu0 0
        %1261 = vmatpush1.bf16.msra.mxu0 %v1214
        %1262 = vmatprep.subr.bf16.mxu0 0
        %1263 = vmatpush1.bf16.msra.mxu0 %v1215
        %1264 = vmatprep.mubr.bf16.mxu0 %v1094
        %1265 = vmatmul.mubr.bf16.gmra.mrb[0].mxu0 %v1093
        %v1266 = vpop.f32.mrb[0].mxu0
        %v1267 = vadd.f32 %v1134, %v1266
        %v1268 = vpop.f32.mrb[0].mxu0
        %v1269 = vpop.f32.mrb[0].mxu0
        %v1270 = vadd.f32 %v1134, %v1269
        %v1271 = vpop.f32.mrb[0].mxu0
        %1272 = vmatprep.mubr.bf16.mxu0 %v1096
        %1273 = vmatmul.mubr.bf16.gmra.mrb[0].mxu0 %v1095
        %v1274 = vpop.f32.mrb[0].mxu0
        %v1275 = vadd.f32 %v1134, %v1274
        %v1276 = vpop.f32.mrb[0].mxu0
        %v1277 = vpop.f32.mrb[0].mxu0
        %v1278 = vadd.f32 %v1134, %v1277
        %v1279 = vpop.f32.mrb[0].mxu0
        %1280 = vdwg.mxu0
        %v1281 = vmul.f32 %v1267, 0.5
        %v1282 = vmul.f32 %v1270, 0.5
        %v1283 = vmul.f32 %v1275, 0.5
        %v1284 = vmul.f32 %v1278, 0.5
        %v1285 = vtanh.pop %v1281
        %v1286 = vtanh.pop %v1282
        %v1287 = vtanh.pop %v1283
        %v1288 = vtanh.pop %v1284
        %v1289 = vadd.f32 %v1285, 1.0
        %v1290 = vadd.f32 %v1286, 1.0
        %v1291 = vadd.f32 %v1287, 1.0
        %v1292 = vadd.f32 %v1288, 1.0
        %v1293 = vmul.f32 %v1289, 0.5
        %v1294 = vmul.f32 %v1290, 0.5
        %v1295 = vmul.f32 %v1291, 0.5
        %v1296 = vmul.f32 %v1292, 0.5
        %v1297 = vpack.c.bf16 %v1294, %v1293
        %v1298 = vpack.c.bf16 %v1296, %v1295
        %v1301 = vunpack.c.l.b16 %v1297
        %v1302 = vunpack.c.h.b16 %v1297
        %v1303 = vunpack.c.l.b16 %v1298
        %v1304 = vunpack.c.h.b16 %v1298
        %v1305 = vpack.c.b16 %v1301, %v1301
        %v1306 = vpack.c.b16 %v1302, %v1302
        %v1307 = vpack.c.b16 %v1303, %v1303
        %v1308 = vpack.c.b16 %v1304, %v1304
        %1313 = vst [vmem:[%s370] sm:$0xf] %v1305
        %1314 = vst [vmem:[%s370 + $0x4] sm:$0xf] %v1306
        %1315 = vst [vmem:[%s370 + $0x8] sm:$0xf] %v1307
        %1316 = vst [vmem:[%s370 + $0xc] sm:$0xf] %v1308
        %s1317 = sand.u32 %s227, 1
        %s1318 = scalar_lea.sflag [#allocation4], %s1317
        %s1319 = sand.u32 %s227, 1
        %s1320 = smul.addr %s1319, 16
        %s1321 = scalar_lea.vmem [#allocation8], %s1320
        // Predicated region
        $region69: #{tpu_custom_call.1} parent=55 // pred_check
          %p1322 = pneg %p237
        $region70: #{tpu_custom_call.1} parent=55 // pred_check_branch
          %1324 = sbr.rel (%p1322) target = $region72
        $region71: #{tpu_custom_call.1} parent=55 // pred_region
          %s1325 = smul.u32 4, %s25
          %s1327 = ssub.s32 256, 256
          %1328 = vsyncadd %s1318, %s1327
          %s1329 = smul.addr %s1325, 64
          %s1330 = scalar_lea.hbm %s9, %s1329
          %s1331 = sshll.u32 %s1321, 4
          %s1332 = int_to_ptr.vmem [resolvable:$true] %s1331
          %1337 = dma.vmem_to_hbm [thread:$0]  %s1332, 256, %s1330, %s1318, 64, 64, 4
        $region72: #{tpu_custom_call.1} parent=55 // pred_fallthru
          _
      $region56: #{tpu_custom_call.1} parent=5 // pred_fallthru
        _
      %p1338 = scmp.le.s32.totalorder 2, %s20
      // Predicated region
      $region73: #{tpu_custom_call.1} parent=5 // pred_check
        %p1339 = pneg %p1338
      $region74: #{tpu_custom_call.1} parent=5 // pred_check_branch
        %1341 = sbr.rel (%p1339) target = $region76
      $region75: #{tpu_custom_call.1} parent=5 // pred_region
        %s1342 = ssub.s32 %s20, 2
        // Predicated region
        $region77: #{tpu_custom_call.1} parent=75 // pred_check
          %p1343 = pneg %p243
        $region78: #{tpu_custom_call.1} parent=75 // pred_check_branch
          %1345 = sbr.rel (%p1343) target = $region80
        $region79: #{tpu_custom_call.1} parent=75 // pred_region
          %s1346 = sand.u32 %s228, 1
          %s1347 = scalar_lea.sflag [#allocation4], %s1346
          %s1348 = sand.u32 %s228, 1
          %s1349 = smul.addr %s1348, 16
          %s1350 = scalar_lea.vmem [#allocation8], %s1349
          %1351 = dma.done %s1347, 256
        $region80: #{tpu_custom_call.1} parent=75 // pred_fallthru
          _
      $region76: #{tpu_custom_call.1} parent=5 // pred_fallthru
        _
    $region6: #{tpu_custom_call.1} parent=1 // loop_footer
      %s24 = sadd.s32 1, %s20
    $region7: #{tpu_custom_call.1} parent=1 // loop_footer_branch
      %19 = sbr.rel target = $region3
    $region8: #{tpu_custom_call.1} parent=1 // loop_exit
      _
    %1352 = vsyncpa [#allocation3], 1
    %s1353 = scalar_lea.sflag [#allocation3], 1
    %1354 = vsyncpa %s1353, 1
    %1355 = vsyncpa [#allocation6], 1
    %1356 = vsyncpa [#allocation4], 1
    %s1357 = scalar_lea.sflag [#allocation4], 1
    %1358 = vsyncpa %s1357, 1

</llo_original>
